<compile_context>
chip_gen: v7x
topology: tpu7x:2x2x1
jax: 0.10.0
libtpu: 0.0.40
codegen_flags: <defaults>
</compile_context>

<pallas_src>
import functools

import jax
import jax.numpy as jnp
from jax.experimental import pallas as pl
from jax.experimental.pallas import tpu as pltpu

LN_EPS = 1e-5  # torch.nn.LayerNorm default eps


def _round_up(x, m):
    return ((x + m - 1) // m) * m


def _proj_ln_kernel(x_ref, w_ref, pvec_ref, a_ref, o_ref, *, stats_precision):
    # x_ref    : (tmr, K*pack)      packed row tile (pack original rows / row)
    # w_ref    : (K*pack, D*pack)   block-diagonal Linear weight (W.T blocks)
    # pvec_ref : (3, D*pack)        [bias; gamma; beta], each tiled `pack` times
    # a_ref    : (D*pack, D*pack)   block-diagonal averaging matrix (1/D)
    # o_ref    : (tmr, D*pack)      lane-dense output tile
    x = x_ref[...].astype(jnp.float32)
    bias = pvec_ref[0:1, :]
    gamma = pvec_ref[1:2, :]
    beta = pvec_ref[2:3, :]

    # Linear (applied to each packed sub-row via the block-diagonal weight).
    y = jnp.dot(
        x, w_ref[...],
        preferred_element_type=jnp.float32,
        precision=jax.lax.Precision.HIGHEST,  # K is tiny -> always free
    ) + bias

    # Segmented LayerNorm over each D-wide lane group: the averaging matrix
    # broadcasts each group's mean back across that group's lanes (MXU work,
    # which has slack -- the kernel is DMA-bound on v6e/v7x).
    mean = jnp.dot(y, a_ref[...], preferred_element_type=jnp.float32,
                   precision=stats_precision)
    c = y - mean
    var = jnp.dot(c * c, a_ref[...], preferred_element_type=jnp.float32,
                  precision=stats_precision)

    out = c * jax.lax.rsqrt(var + LN_EPS) * gamma + beta
    o_ref[...] = out.astype(o_ref.dtype)


def pack_cont_proj_params(w, b, ln_gamma, ln_beta):
    """Build the packed/block-diagonal parameters ONCE per weight set.

    w        : (cont_proj_dim, cont_num)   -- PyTorch nn.Linear weight layout
    b        : (cont_proj_dim,)
    ln_gamma : (cont_proj_dim,)
    ln_beta  : (cont_proj_dim,)

    Returns (w_blk, pvec, a_blk, pack) with
      w_blk: (K*pack, D*pack), pvec: (3, D*pack), a_blk: (D*pack, D*pack).
    """
    D, K = w.shape
    pack = max(1, 128 // D) if D <= 128 else 1  # largest pack with D*pack <= 128
    Kp, Dp = K * pack, D * pack

    w_t = w.astype(jnp.float32).T                                   # (K, D)
    eye = jnp.eye(pack, dtype=jnp.float32)
    w_blk = jnp.einsum("pq,kd->pkqd", eye, w_t).reshape(Kp, Dp)
    a_blk = jnp.einsum(
        "pq,de->pdqe", eye, jnp.full((D, D), 1.0 / D, dtype=jnp.float32)
    ).reshape(Dp, Dp)
    pvec = jnp.stack(
        [
            jnp.tile(b.astype(jnp.float32), pack),
            jnp.tile(ln_gamma.astype(jnp.float32), pack),
            jnp.tile(ln_beta.astype(jnp.float32), pack),
        ],
        axis=0,
    )                                                               # (3, Dp)
    return w_blk, pvec, a_blk, pack


@functools.partial(
    jax.jit,
    static_argnames=("pack", "tile_rows_packed", "out_dtype", "stats_precision"),
)
def cont_embedding_projector_packed(
    cont_x,
    w_blk,
    pvec,
    a_blk,
    *,
    pack,
    tile_rows_packed=4096,
    out_dtype=None,
    stats_precision=jax.lax.Precision.HIGHEST,
):
    """cont_x: (batch, seq, cont_num) -> (batch, seq, cont_proj_dim)."""
    batch, seq, K = cont_x.shape
    Kp, Dp = w_blk.shape
    assert Kp == K * pack, (Kp, K, pack)
    D = Dp // pack
    M = batch * seq
    out_dtype = cont_x.dtype if out_dtype is None else out_dtype

    # Pad a handful of rows so M is a multiple of pack (keeps the lane-dense
    # packed path uniform); padded rows are sliced off at the end.
    Mp = _round_up(M, pack)
    x2d = cont_x.reshape(M, K)
    if Mp != M:
        x2d = jnp.pad(x2d, ((0, Mp - M), (0, 0)))
    Mr = Mp // pack
    xp = x2d.reshape(Mr, Kp)  # free row-major relabel (no data movement)

    # Row tile in PACKED rows: big enough that per-step DMA (>~1 us) dwarfs the
    # ~0.35 us per-grid-step overhead, but capped so (a) the problem still
    # splits into >=2 grid steps (keeps both v7x TensorCores busy) and
    # (b) I/O double-buffers + f32 intermediates stay well inside VMEM.
    tmr = int(tile_rows_packed)
    if Mr >= 64:
        tmr = min(tmr, _round_up(pl.cdiv(Mr, 2), 32))
    tmr = min(tmr, Mr)
    if tmr < Mr:
        tmr = max(8, (tmr // 32) * 32)  # multiple of 8 required when not full
    grid = (pl.cdiv(Mr, tmr),)

    itemsize_in = jnp.dtype(cont_x.dtype).itemsize
    itemsize_out = jnp.dtype(out_dtype).itemsize
    cost = pl.CostEstimate(
        flops=2 * Mr * (Kp * Dp + 2 * Dp * Dp) + 6 * Mr * Dp,
        transcendentals=Mr * Dp,
        bytes_accessed=Mr * Kp * itemsize_in
        + Mr * Dp * itemsize_out
        + (Kp * Dp + 3 * Dp + Dp * Dp) * 4,
    )

    kernel = functools.partial(_proj_ln_kernel, stats_precision=stats_precision)

    out2d = pl.pallas_call(
        kernel,
        out_shape=jax.ShapeDtypeStruct((Mr, Dp), out_dtype),
        grid_spec=pltpu.PrefetchScalarGridSpec(
            num_scalar_prefetch=0,
            grid=grid,
            in_specs=[
                pl.BlockSpec((tmr, Kp), lambda i: (i, 0)),
                pl.BlockSpec((Kp, Dp), lambda i: (0, 0)),
                pl.BlockSpec((3, Dp), lambda i: (0, 0)),
                pl.BlockSpec((Dp, Dp), lambda i: (0, 0)),
            ],
            out_specs=pl.BlockSpec((tmr, Dp), lambda i: (i, 0)),
        ),
        compiler_params=pltpu.CompilerParams(
            dimension_semantics=("parallel",),
            vmem_limit_bytes=48 * 1024 * 1024,
        ),
        cost_estimate=cost,
    )(xp, w_blk, pvec, a_blk)

    out = out2d.reshape(Mp, D)
    if Mp != M:
        out = out[:M]
    return out.reshape(batch, seq, D)


class ContEmbeddingProjector:
    """Convenience wrapper: packs parameters once, reuses them every call."""

    def __init__(self, w, b, ln_gamma, ln_beta, *, tile_rows_packed=4096,
                 out_dtype=None, stats_precision=jax.lax.Precision.HIGHEST):
        self.w_blk, self.pvec, self.a_blk, self.pack = pack_cont_proj_params(
            w, b, ln_gamma, ln_beta
        )
        self.tile_rows_packed = tile_rows_packed
        self.out_dtype = out_dtype
        self.stats_precision = stats_precision

    def __call__(self, cont_x):
        return cont_embedding_projector_packed(
            cont_x,
            self.w_blk,
            self.pvec,
            self.a_blk,
            pack=self.pack,
            tile_rows_packed=self.tile_rows_packed,
            out_dtype=self.out_dtype,
            stats_precision=self.stats_precision,
        )


# ----------------------------------------------------------------------------
# Reference + tests
# ----------------------------------------------------------------------------
def _reference(cont_x, w, b, ln_gamma, ln_beta):
    # Pure-JAX f32 reference of Linear + LayerNorm (PyTorch semantics).
    y = jnp.einsum(
        "bsc,oc->bso",
        cont_x.astype(jnp.float32),
        w.astype(jnp.float32),
        precision=jax.lax.Precision.HIGHEST,
    ) + b.astype(jnp.float32)
    mean = jnp.mean(y, axis=-1, keepdims=True)
    var = jnp.mean((y - mean) ** 2, axis=-1, keepdims=True)
    yn = (y - mean) / jnp.sqrt(var + LN_EPS)
    return yn * ln_gamma.astype(jnp.float32) + ln_beta.astype(jnp.float32)


def _make_params(key, cont_num, cont_proj_dim):
    k_w, k_b, k_g, k_beta = jax.random.split(key, 4)
    w = jax.random.normal(k_w, (cont_proj_dim, cont_num), dtype=jnp.float32) * 0.1
    b = jax.random.normal(k_b, (cont_proj_dim,), dtype=jnp.float32) * 0.1
    g = jnp.ones((cont_proj_dim,), jnp.float32) + 0.05 * jax.random.normal(
        k_g, (cont_proj_dim,), dtype=jnp.float32
    )
    beta = 0.05 * jax.random.normal(k_beta, (cont_proj_dim,), dtype=jnp.float32)
    return w, b, g, beta


def _run_case(key, batch, seq, cont_num, cont_proj_dim):
    k_x, k_p = jax.random.split(key)
    cont_x = jax.random.normal(k_x, (batch, seq, cont_num), dtype=jnp.float32)
    w, b, g, beta = _make_params(k_p, cont_num, cont_proj_dim)

    proj = ContEmbeddingProjector(w, b, g, beta)
    out = jax.block_until_ready(proj(cont_x))

    ref = _reference(cont_x, w, b, g, beta)
    assert out.shape == (batch, seq, cont_proj_dim), out.shape
    err = float(jnp.max(jnp.abs(out.astype(jnp.float32) - ref)))
    assert jnp.allclose(out.astype(jnp.float32), ref, atol=1e-4, rtol=1e-4), err
    return err


if __name__ == "__main__":
    key = jax.random.PRNGKey(0)
    k1, k2, k3, k4 = jax.random.split(key, 4)

    # Small shapes implied by the module (args.cont_num=4, args.cont_proj_dim=32).
    _run_case(k1, batch=2, seq=16, cont_num=4, cont_proj_dim=32)

    # Larger case: exercises grid > 1, parallel row tiling, ragged last block.
    _run_case(k2, batch=8, seq=600, cont_num=4, cont_proj_dim=32)

    # 128 % D != 0 -> largest pack with D*pack <= 128 (pack=2, 96 lanes).
    _run_case(k3, batch=2, seq=12, cont_num=4, cont_proj_dim=48)

    # M % pack != 0 -> pad-and-slice path (stays lane-dense).
    _run_case(k4, batch=3, seq=7, cont_num=4, cont_proj_dim=32)

    print("KERNEL_OK")
</pallas_src>

<mosaic_0001>
module attributes {stable_mosaic.version = 11 : i64} {
  func.func @_proj_ln_kernel(%arg0: i32, %arg1: memref<8x16xf32, #tpu.memory_space<vmem>>, %arg2: memref<16x128xf32, #tpu.memory_space<vmem>>, %arg3: memref<3x128xf32, #tpu.memory_space<vmem>>, %arg4: memref<128x128xf32, #tpu.memory_space<vmem>>, %arg5: memref<8x128xf32, #tpu.memory_space<vmem>>) attributes {dimension_semantics = [#tpu.dimension_semantics<parallel>], iteration_bounds = array<i64: 1>, scalar_prefetch = 0 : i64, scratch_operands = 0 : i64, tpu.core_type = #tpu.core_type<tc>, window_params = [{transform_indices = @transform_0, window_bounds = array<i64: 8, 16>}, {pipeline_mode = #tpu.pipeline_mode<synchronous>, transform_indices = @transform_1, window_bounds = array<i64: 16, 128>}, {pipeline_mode = #tpu.pipeline_mode<synchronous>, transform_indices = @transform_2, window_bounds = array<i64: 3, 128>}, {pipeline_mode = #tpu.pipeline_mode<synchronous>, transform_indices = @transform_3, window_bounds = array<i64: 128, 128>}, {transform_indices = @transform_4, window_bounds = array<i64: 8, 128>}]} {
    %c0 = arith.constant 0 : index
    %c0_0 = arith.constant 0 : index
    %0 = vector.load %arg1[%c0, %c0_0] : memref<8x16xf32, #tpu.memory_space<vmem>>, vector<8x16xf32>
    %c0_1 = arith.constant 0 : index
    %c0_2 = arith.constant 0 : index
    %1 = vector.load %arg3[%c0_1, %c0_2] : memref<3x128xf32, #tpu.memory_space<vmem>>, vector<1x128xf32>
    %c1 = arith.constant 1 : index
    %c0_3 = arith.constant 0 : index
    %2 = vector.load %arg3[%c1, %c0_3] : memref<3x128xf32, #tpu.memory_space<vmem>>, vector<1x128xf32>
    %c2 = arith.constant 2 : index
    %c0_4 = arith.constant 0 : index
    %3 = vector.load %arg3[%c2, %c0_4] : memref<3x128xf32, #tpu.memory_space<vmem>>, vector<1x128xf32>
    %c0_5 = arith.constant 0 : index
    %c0_6 = arith.constant 0 : index
    %4 = vector.load %arg2[%c0_5, %c0_6] : memref<16x128xf32, #tpu.memory_space<vmem>>, vector<16x128xf32>
    %cst = arith.constant dense<0.000000e+00> : vector<8x128xf32>
    %5 = tpu.matmul %0, %4, %cst {dimension_numbers = #tpu.dot_dimension_numbers<[1], [0], [0], [1], [0, 0, 1, 1], [], []>, precision = #tpu.contract_precision<fp32>} : vector<8x16xf32>, vector<16x128xf32>, vector<8x128xf32> -> vector<8x128xf32>
    %6 = vector.broadcast %1 : vector<1x128xf32> to vector<8x128xf32>
    %7 = arith.addf %5, %6 : vector<8x128xf32>
    %c0_7 = arith.constant 0 : index
    %c0_8 = arith.constant 0 : index
    %8 = vector.load %arg4[%c0_7, %c0_8] : memref<128x128xf32, #tpu.memory_space<vmem>>, vector<128x128xf32>
    %cst_9 = arith.constant dense<0.000000e+00> : vector<8x128xf32>
    %9 = tpu.matmul %7, %8, %cst_9 {dimension_numbers = #tpu.dot_dimension_numbers<[1], [0], [0], [1], [0, 0, 1, 1], [], []>, precision = #tpu.contract_precision<fp32>} : vector<8x128xf32>, vector<128x128xf32>, vector<8x128xf32> -> vector<8x128xf32>
    %10 = arith.subf %7, %9 : vector<8x128xf32>
    %11 = arith.mulf %10, %10 : vector<8x128xf32>
    %c0_10 = arith.constant 0 : index
    %c0_11 = arith.constant 0 : index
    %12 = vector.load %arg4[%c0_10, %c0_11] : memref<128x128xf32, #tpu.memory_space<vmem>>, vector<128x128xf32>
    %cst_12 = arith.constant dense<0.000000e+00> : vector<8x128xf32>
    %13 = tpu.matmul %11, %12, %cst_12 {dimension_numbers = #tpu.dot_dimension_numbers<[1], [0], [0], [1], [0, 0, 1, 1], [], []>, precision = #tpu.contract_precision<fp32>} : vector<8x128xf32>, vector<128x128xf32>, vector<8x128xf32> -> vector<8x128xf32>
    %cst_13 = arith.constant 9.99999974E-6 : f32
    %14 = vector.broadcast %cst_13 : f32 to vector<8x128xf32>
    %15 = arith.addf %13, %14 : vector<8x128xf32>
    %16 = math.rsqrt %15 : vector<8x128xf32>
    %17 = arith.mulf %10, %16 : vector<8x128xf32>
    %18 = vector.broadcast %2 : vector<1x128xf32> to vector<8x128xf32>
    %19 = arith.mulf %17, %18 : vector<8x128xf32>
    %20 = vector.broadcast %3 : vector<1x128xf32> to vector<8x128xf32>
    %21 = arith.addf %19, %20 : vector<8x128xf32>
    %c0_14 = arith.constant 0 : index
    %c0_15 = arith.constant 0 : index
    %22 = vector.load %arg5[%c0_14, %c0_15] : memref<8x128xf32, #tpu.memory_space<vmem>>, vector<8x128xf32>
    tpu.vector_store %arg5[%c0_14, %c0_15], %21 {strides = array<i32>} : memref<8x128xf32, #tpu.memory_space<vmem>>, vector<8x128xf32>,
    return
  }
  func.func @transform_0(%arg0: i32) -> (i32, i32) {
    %c0_i32 = arith.constant 0 : i32
    %c0_i32_0 = arith.constant 0 : i32
    return %arg0, %c0_i32 : i32, i32
  }
  func.func @transform_1(%arg0: i32) -> (i32, i32) {
    %c0_i32 = arith.constant 0 : i32
    %c0_i32_0 = arith.constant 0 : i32
    %c0_i32_1 = arith.constant 0 : i32
    return %c0_i32, %c0_i32_0 : i32, i32
  }
  func.func @transform_2(%arg0: i32) -> (i32, i32) {
    %c0_i32 = arith.constant 0 : i32
    %c0_i32_0 = arith.constant 0 : i32
    %c0_i32_1 = arith.constant 0 : i32
    return %c0_i32, %c0_i32_0 : i32, i32
  }
  func.func @transform_3(%arg0: i32) -> (i32, i32) {
    %c0_i32 = arith.constant 0 : i32
    %c0_i32_0 = arith.constant 0 : i32
    %c0_i32_1 = arith.constant 0 : i32
    return %c0_i32, %c0_i32_0 : i32, i32
  }
  func.func @transform_4(%arg0: i32) -> (i32, i32) {
    %c0_i32 = arith.constant 0 : i32
    %c0_i32_0 = arith.constant 0 : i32
    return %arg0, %c0_i32 : i32, i32
  }
}

</mosaic_0001>

<llo_original>
// kernel: cont_embedding_projector_packed.1
$region0: #{cont_embedding_projector_packed.1}
  #allocation0 [shape = 'u32[]', space=smem, size = 0x4, offset = 0x4, fixed_abs, tag = 'smem constant byte address 0x4 - core index']
  #allocation1 [shape = 'u32[144,128]{1,0:T(1,128)}', space=vmem, size = 0x12000, scoped, tag = 'internal scratch']
  %s0 = inlined_call_operand.vmem [shape: f32[8,16], index: 0, kind: input, shape index: {}]
  %s1 = inlined_call_operand.vmem [shape: f32[16,128], index: 1, kind: input, shape index: {}]
  %s2 = inlined_call_operand.vmem [shape: f32[3,128], index: 2, kind: input, shape index: {}]
  %s3 = inlined_call_operand.hbm [shape: f32[128,128], index: 3, kind: input, shape index: {}]
  %s4 = inlined_call_operand.vmem [shape: f32[8,128], index: 4, kind: output, shape index: {}]
  %s5 = sld [smem:[#allocation0]]
  $region30: #{cont_embedding_projector_packed.1} parent=0
    _
  %s7 = ssub.s32 1, %s5
  %s8 = scalar_select 0, %s7, %s5
  $region1: #{cont_embedding_projector_packed.1} parent=0
    #allocation2 [shape = 'u8[65536]{0}', space=vmem, size = 0x10000, scoped, tag = 'input window, operand 3, single buffered']
    #allocation3 [shape = 's32[1]{0}', space=sflag, size = 0x4, scoped, tag = 'scoped memory for cont_embedding_projector_packed.1']
    %9 = vsyncpa [#allocation3], 0
    // Predicated region
    $region2: #{cont_embedding_projector_packed.1} parent=1 // pred_check
      _
    $region3: #{cont_embedding_projector_packed.1} parent=1 // pred_check_branch
      %11 = sbr.rel (0) target = $region5
    $region4: #{cont_embedding_projector_packed.1} parent=1 // pred_region
      _
    $region5: #{cont_embedding_projector_packed.1} parent=1 // pred_fallthru
      _
    // Predicated region
    $region6: #{cont_embedding_projector_packed.1} parent=1 // pred_check
      _
    $region7: #{cont_embedding_projector_packed.1} parent=1 // pred_check_branch
      %13 = sbr.rel (0) target = $region9
    $region8: #{cont_embedding_projector_packed.1} parent=1 // pred_region
      _
    $region9: #{cont_embedding_projector_packed.1} parent=1 // pred_fallthru
      _
    // Predicated region
    $region10: #{cont_embedding_projector_packed.1} parent=1 // pred_check
      _
    $region11: #{cont_embedding_projector_packed.1} parent=1 // pred_check_branch
      %15 = sbr.rel (0) target = $region13
    $region12: #{cont_embedding_projector_packed.1} parent=1 // pred_region
      _
    $region13: #{cont_embedding_projector_packed.1} parent=1 // pred_fallthru
      _
    // Predicated region
    $region14: #{cont_embedding_projector_packed.1} parent=1 // pred_check
      _
    $region15: #{cont_embedding_projector_packed.1} parent=1 // pred_check_branch
      %17 = sbr.rel (0) target = $region17
    $region16: #{cont_embedding_projector_packed.1} parent=1 // pred_region
      %s19 = ssub.s32 2048, 2048
      %20 = vsyncadd [#allocation3], %s19
      %s21 = sshll.u32 [#allocation2], 4
      %s22 = int_to_ptr.vmem [resolvable:$true] %s21
      %27 = dma.hbm_to_vmem [thread:$0]  %s3, 2048, %s22, [#allocation3], 128, 128, 8
    $region17: #{cont_embedding_projector_packed.1} parent=1 // pred_fallthru
      _
    // Predicated region
    $region18: #{cont_embedding_projector_packed.1} parent=1 // pred_check
      _
    $region19: #{cont_embedding_projector_packed.1} parent=1 // pred_check_branch
      %29 = sbr.rel (0) target = $region21
    $region20: #{cont_embedding_projector_packed.1} parent=1 // pred_region
      %30 = dma.done [#allocation3], 2048
    $region21: #{cont_embedding_projector_packed.1} parent=1 // pred_fallthru
      _
    %v31 = vld [vmem:[%s0] sm:$0xff]
    %v32 = vld [vmem:[%s2] sm:$0x1]
    %v33 = vld [vmem:[%s2 + $0x1] sm:$0x1]
    %v34 = vld [vmem:[%s2 + $0x2] sm:$0x1]
    %v35 = vld [vmem:[%s1] sm:$0xff]
    %v36 = vld [vmem:[%s1 + $0x8] sm:$0xff]
    %v37 = vlaneseq
    %v38 = vshrl.u32 %v37, 7
    %v39 = vsub.s32 0, %v38
    %v40 = vrot.slane %v32, %v39
    %vm41 = vcmask 130048
    %v43 = vsel %vm41, %v31, 0
    %45 = vmatprep.subr.mxu0 0.0
    %v46 = vand.u32 %v35, 4294901760
    %47 = vmatpush1.msra.mxu0 %v46
    %48 = vmatprep.subr.mxu0 0.0
    %v49 = vand.u32 %v36, 4294901760
    %50 = vmatpush1.msra.mxu0 %v49
    %51 = vmatprep.subr.mxu0 0.0
    %52 = vmatpush1.msra.mxu0 0.0
    %53 = vmatprep.subr.mxu0 0.0
    %54 = vmatpush1.msra.mxu0 0.0
    %55 = vmatprep.subr.mxu0 0.0
    %56 = vmatpush1.msra.mxu0 0.0
    %57 = vmatprep.subr.mxu0 0.0
    %58 = vmatpush1.msra.mxu0 0.0
    %59 = vmatprep.subr.mxu0 0.0
    %60 = vmatpush1.msra.mxu0 0.0
    %61 = vmatprep.subr.mxu0 0.0
    %62 = vmatpush1.msra.mxu0 0.0
    %63 = vmatprep.subr.mxu0 0.0
    %64 = vmatpush1.msra.mxu0 0.0
    %65 = vmatprep.subr.mxu0 0.0
    %66 = vmatpush1.msra.mxu0 0.0
    %67 = vmatprep.subr.mxu0 0.0
    %68 = vmatpush1.msra.mxu0 0.0
    %69 = vmatprep.subr.mxu0 0.0
    %70 = vmatpush1.msra.mxu0 0.0
    %71 = vmatprep.subr.mxu0 0.0
    %72 = vmatpush1.msra.mxu0 0.0
    %73 = vmatprep.subr.mxu0 0.0
    %74 = vmatpush1.msra.mxu0 0.0
    %75 = vmatprep.subr.mxu0 0.0
    %76 = vmatpush1.msra.mxu0 0.0
    %77 = vmatprep.subr.mxu0 0.0
    %78 = vmatpush1.msra.mxu0 0.0
    %79 = vmatprep.subr.mxu0 0.0
    %80 = vmatpush1.msra.mxu0 0.0
    %81 = vmatprep.subr.mxu0 0.0
    %82 = vmatpush1.msra.mxu0 0.0
    %83 = vmatprep.subr.mxu0 0.0
    %84 = vmatpush1.msra.mxu0 0.0
    %85 = vmatprep.subr.mxu0 0.0
    %86 = vmatpush1.msra.mxu0 0.0
    %87 = vmatprep.subr.mxu0 0.0
    %88 = vmatpush1.msra.mxu0 0.0
    %89 = vmatprep.subr.mxu0 0.0
    %90 = vmatpush1.msra.mxu0 0.0
    %91 = vmatprep.subr.mxu0 0.0
    %92 = vmatpush1.msra.mxu0 0.0
    %93 = vmatprep.subr.mxu0 0.0
    %94 = vmatpush1.msra.mxu0 0.0
    %95 = vmatprep.subr.mxu0 0.0
    %96 = vmatpush1.msra.mxu0 0.0
    %97 = vmatprep.subr.mxu0 0.0
    %98 = vmatpush1.msra.mxu0 0.0
    %99 = vmatprep.subr.mxu0 0.0
    %100 = vmatpush1.msra.mxu0 0.0
    %101 = vmatprep.subr.mxu0 0.0
    %102 = vmatpush1.msra.mxu0 0.0
    %103 = vmatprep.subr.mxu0 0.0
    %104 = vmatpush1.msra.mxu0 0.0
    %105 = vmatprep.subr.mxu0 0.0
    %106 = vmatpush1.msra.mxu0 0.0
    %107 = vmatprep.subr.mxu0 0.0
    %108 = vmatpush1.msra.mxu0 0.0
    %109 = vmatprep.subr.mxu0 0.0
    %110 = vmatpush1.msra.mxu0 0.0
    %111 = vmatprep.mubr.f32.mxu0 0.0
    %v112 = vand.u32 %v43, 4294901760
    %v113 = vsub.f32 %v43, %v112
    %v114 = vand.u32 %v113, 4294901760
    %v115 = vsub.f32 %v113, %v114
    %v116 = vand.u32 %v115, 4294901760
    %117 = vmatmul.mubr.f32.gmra.mrb[0].mxu0 %v116
    %v118 = vpop.f32.mrb[0].mxu0
    %v119 = vadd.f32 %v40, %v118
    %v120 = vpop.f32.mrb[0].mxu0
    %121 = vdwg.mxu0
    %122 = vmatprep.subr.mxu0 0.0
    %v123 = vand.u32 %v35, 4294901760
    %v124 = vsub.f32 %v35, %v123
    %v125 = vand.u32 %v124, 4294901760
    %v126 = vsub.f32 %v124, %v125
    %v127 = vand.u32 %v126, 4294901760
    %128 = vmatpush1.msra.mxu0 %v127
    %129 = vmatprep.subr.mxu0 0.0
    %v130 = vand.u32 %v36, 4294901760
    %v131 = vsub.f32 %v36, %v130
    %v132 = vand.u32 %v131, 4294901760
    %v133 = vsub.f32 %v131, %v132
    %v134 = vand.u32 %v133, 4294901760
    %135 = vmatpush1.msra.mxu0 %v134
    %136 = vmatprep.subr.mxu0 0.0
    %137 = vmatpush1.msra.mxu0 0.0
    %138 = vmatprep.subr.mxu0 0.0
    %139 = vmatpush1.msra.mxu0 0.0
    %140 = vmatprep.subr.mxu0 0.0
    %141 = vmatpush1.msra.mxu0 0.0
    %142 = vmatprep.subr.mxu0 0.0
    %143 = vmatpush1.msra.mxu0 0.0
    %144 = vmatprep.subr.mxu0 0.0
    %145 = vmatpush1.msra.mxu0 0.0
    %146 = vmatprep.subr.mxu0 0.0
    %147 = vmatpush1.msra.mxu0 0.0
    %148 = vmatprep.subr.mxu0 0.0
    %149 = vmatpush1.msra.mxu0 0.0
    %150 = vmatprep.subr.mxu0 0.0
    %151 = vmatpush1.msra.mxu0 0.0
    %152 = vmatprep.subr.mxu0 0.0
    %153 = vmatpush1.msra.mxu0 0.0
    %154 = vmatprep.subr.mxu0 0.0
    %155 = vmatpush1.msra.mxu0 0.0
    %156 = vmatprep.subr.mxu0 0.0
    %157 = vmatpush1.msra.mxu0 0.0
    %158 = vmatprep.subr.mxu0 0.0
    %159 = vmatpush1.msra.mxu0 0.0
    %160 = vmatprep.subr.mxu0 0.0
    %161 = vmatpush1.msra.mxu0 0.0
    %162 = vmatprep.subr.mxu0 0.0
    %163 = vmatpush1.msra.mxu0 0.0
    %164 = vmatprep.subr.mxu0 0.0
    %165 = vmatpush1.msra.mxu0 0.0
    %166 = vmatprep.subr.mxu0 0.0
    %167 = vmatpush1.msra.mxu0 0.0
    %168 = vmatprep.subr.mxu0 0.0
    %169 = vmatpush1.msra.mxu0 0.0
    %170 = vmatprep.subr.mxu0 0.0
    %171 = vmatpush1.msra.mxu0 0.0
    %172 = vmatprep.subr.mxu0 0.0
    %173 = vmatpush1.msra.mxu0 0.0
    %174 = vmatprep.subr.mxu0 0.0
    %175 = vmatpush1.msra.mxu0 0.0
    %176 = vmatprep.subr.mxu0 0.0
    %177 = vmatpush1.msra.mxu0 0.0
    %178 = vmatprep.subr.mxu0 0.0
    %179 = vmatpush1.msra.mxu0 0.0
    %180 = vmatprep.subr.mxu0 0.0
    %181 = vmatpush1.msra.mxu0 0.0
    %182 = vmatprep.subr.mxu0 0.0
    %183 = vmatpush1.msra.mxu0 0.0
    %184 = vmatprep.subr.mxu0 0.0
    %185 = vmatpush1.msra.mxu0 0.0
    %186 = vmatprep.subr.mxu0 0.0
    %187 = vmatpush1.msra.mxu0 0.0
    %188 = vmatprep.subr.mxu0 0.0
    %189 = vmatpush1.msra.mxu0 0.0
    %190 = vmatprep.subr.mxu0 0.0
    %191 = vmatpush1.msra.mxu0 0.0
    %192 = vmatprep.subr.mxu0 0.0
    %193 = vmatpush1.msra.mxu0 0.0
    %194 = vmatprep.subr.mxu0 0.0
    %195 = vmatpush1.msra.mxu0 0.0
    %196 = vmatprep.mubr.f32.mxu0 0.0
    %v197 = vand.u32 %v43, 4294901760
    %198 = vmatmul.mubr.f32.gmra.mrb[0].mxu0 %v197
    %v199 = vpop.f32.mrb[0].mxu0
    %v200 = vadd.f32 %v119, %v199
    %v201 = vpop.f32.mrb[0].mxu0
    %202 = vdwg.mxu0
    %203 = vmatprep.subr.mxu0 0.0
    %v204 = vand.u32 %v35, 4294901760
    %v205 = vsub.f32 %v35, %v204
    %206 = vmatpush1.msra.mxu0 %v205
    %207 = vmatprep.subr.mxu0 0.0
    %v208 = vand.u32 %v36, 4294901760
    %v209 = vsub.f32 %v36, %v208
    %210 = vmatpush1.msra.mxu0 %v209
    %211 = vmatprep.subr.mxu0 0.0
    %212 = vmatpush1.msra.mxu0 0.0
    %213 = vmatprep.subr.mxu0 0.0
    %214 = vmatpush1.msra.mxu0 0.0
    %215 = vmatprep.subr.mxu0 0.0
    %216 = vmatpush1.msra.mxu0 0.0
    %217 = vmatprep.subr.mxu0 0.0
    %218 = vmatpush1.msra.mxu0 0.0
    %219 = vmatprep.subr.mxu0 0.0
    %220 = vmatpush1.msra.mxu0 0.0
    %221 = vmatprep.subr.mxu0 0.0
    %222 = vmatpush1.msra.mxu0 0.0
    %223 = vmatprep.subr.mxu0 0.0
    %224 = vmatpush1.msra.mxu0 0.0
    %225 = vmatprep.subr.mxu0 0.0
    %226 = vmatpush1.msra.mxu0 0.0
    %227 = vmatprep.subr.mxu0 0.0
    %228 = vmatpush1.msra.mxu0 0.0
    %229 = vmatprep.subr.mxu0 0.0
    %230 = vmatpush1.msra.mxu0 0.0
    %231 = vmatprep.subr.mxu0 0.0
    %232 = vmatpush1.msra.mxu0 0.0
    %233 = vmatprep.subr.mxu0 0.0
    %234 = vmatpush1.msra.mxu0 0.0
    %235 = vmatprep.subr.mxu0 0.0
    %236 = vmatpush1.msra.mxu0 0.0
    %237 = vmatprep.subr.mxu0 0.0
    %238 = vmatpush1.msra.mxu0 0.0
    %239 = vmatprep.subr.mxu0 0.0
    %240 = vmatpush1.msra.mxu0 0.0
    %241 = vmatprep.subr.mxu0 0.0
    %242 = vmatpush1.msra.mxu0 0.0
    %243 = vmatprep.subr.mxu0 0.0
    %244 = vmatpush1.msra.mxu0 0.0
    %245 = vmatprep.subr.mxu0 0.0
    %246 = vmatpush1.msra.mxu0 0.0
    %247 = vmatprep.subr.mxu0 0.0
    %248 = vmatpush1.msra.mxu0 0.0
    %249 = vmatprep.subr.mxu0 0.0
    %250 = vmatpush1.msra.mxu0 0.0
    %251 = vmatprep.subr.mxu0 0.0
    %252 = vmatpush1.msra.mxu0 0.0
    %253 = vmatprep.subr.mxu0 0.0
    %254 = vmatpush1.msra.mxu0 0.0
    %255 = vmatprep.subr.mxu0 0.0
    %256 = vmatpush1.msra.mxu0 0.0
    %257 = vmatprep.subr.mxu0 0.0
    %258 = vmatpush1.msra.mxu0 0.0
    %259 = vmatprep.subr.mxu0 0.0
    %260 = vmatpush1.msra.mxu0 0.0
    %261 = vmatprep.subr.mxu0 0.0
    %262 = vmatpush1.msra.mxu0 0.0
    %263 = vmatprep.subr.mxu0 0.0
    %264 = vmatpush1.msra.mxu0 0.0
    %265 = vmatprep.subr.mxu0 0.0
    %266 = vmatpush1.msra.mxu0 0.0
    %267 = vmatprep.subr.mxu0 0.0
    %268 = vmatpush1.msra.mxu0 0.0
    %269 = vmatprep.subr.mxu0 0.0
    %270 = vmatpush1.msra.mxu0 0.0
    %271 = vmatprep.mubr.f32.mxu0 0.0
    %v272 = vand.u32 %v43, 4294901760
    %v273 = vsub.f32 %v43, %v272
    %274 = vmatmul.mubr.f32.gmra.mrb[0].mxu0 %v273
    %v275 = vpop.f32.mrb[0].mxu0
    %v276 = vadd.f32 %v200, %v275
    %v277 = vpop.f32.mrb[0].mxu0
    %278 = vdwg.mxu0
    %279 = vmatprep.subr.mxu0 0.0
    %v280 = vand.u32 %v35, 4294901760
    %281 = vmatpush1.msra.mxu0 %v280
    %282 = vmatprep.subr.mxu0 0.0
    %v283 = vand.u32 %v36, 4294901760
    %284 = vmatpush1.msra.mxu0 %v283
    %285 = vmatprep.subr.mxu0 0.0
    %286 = vmatpush1.msra.mxu0 0.0
    %287 = vmatprep.subr.mxu0 0.0
    %288 = vmatpush1.msra.mxu0 0.0
    %289 = vmatprep.subr.mxu0 0.0
    %290 = vmatpush1.msra.mxu0 0.0
    %291 = vmatprep.subr.mxu0 0.0
    %292 = vmatpush1.msra.mxu0 0.0
    %293 = vmatprep.subr.mxu0 0.0
    %294 = vmatpush1.msra.mxu0 0.0
    %295 = vmatprep.subr.mxu0 0.0
    %296 = vmatpush1.msra.mxu0 0.0
    %297 = vmatprep.subr.mxu0 0.0
    %298 = vmatpush1.msra.mxu0 0.0
    %299 = vmatprep.subr.mxu0 0.0
    %300 = vmatpush1.msra.mxu0 0.0
    %301 = vmatprep.subr.mxu0 0.0
    %302 = vmatpush1.msra.mxu0 0.0
    %303 = vmatprep.subr.mxu0 0.0
    %304 = vmatpush1.msra.mxu0 0.0
    %305 = vmatprep.subr.mxu0 0.0
    %306 = vmatpush1.msra.mxu0 0.0
    %307 = vmatprep.subr.mxu0 0.0
    %308 = vmatpush1.msra.mxu0 0.0
    %309 = vmatprep.subr.mxu0 0.0
    %310 = vmatpush1.msra.mxu0 0.0
    %311 = vmatprep.subr.mxu0 0.0
    %312 = vmatpush1.msra.mxu0 0.0
    %313 = vmatprep.subr.mxu0 0.0
    %314 = vmatpush1.msra.mxu0 0.0
    %315 = vmatprep.subr.mxu0 0.0
    %316 = vmatpush1.msra.mxu0 0.0
    %317 = vmatprep.subr.mxu0 0.0
    %318 = vmatpush1.msra.mxu0 0.0
    %319 = vmatprep.subr.mxu0 0.0
    %320 = vmatpush1.msra.mxu0 0.0
    %321 = vmatprep.subr.mxu0 0.0
    %322 = vmatpush1.msra.mxu0 0.0
    %323 = vmatprep.subr.mxu0 0.0
    %324 = vmatpush1.msra.mxu0 0.0
    %325 = vmatprep.subr.mxu0 0.0
    %326 = vmatpush1.msra.mxu0 0.0
    %327 = vmatprep.subr.mxu0 0.0
    %328 = vmatpush1.msra.mxu0 0.0
    %329 = vmatprep.subr.mxu0 0.0
    %330 = vmatpush1.msra.mxu0 0.0
    %331 = vmatprep.subr.mxu0 0.0
    %332 = vmatpush1.msra.mxu0 0.0
    %333 = vmatprep.subr.mxu0 0.0
    %334 = vmatpush1.msra.mxu0 0.0
    %335 = vmatprep.subr.mxu0 0.0
    %336 = vmatpush1.msra.mxu0 0.0
    %337 = vmatprep.subr.mxu0 0.0
    %338 = vmatpush1.msra.mxu0 0.0
    %339 = vmatprep.subr.mxu0 0.0
    %340 = vmatpush1.msra.mxu0 0.0
    %341 = vmatprep.subr.mxu0 0.0
    %342 = vmatpush1.msra.mxu0 0.0
    %343 = vmatprep.subr.mxu0 0.0
    %344 = vmatpush1.msra.mxu0 0.0
    %345 = vmatprep.mubr.f32.mxu0 0.0
    %v346 = vand.u32 %v43, 4294901760
    %v347 = vsub.f32 %v43, %v346
    %v348 = vand.u32 %v347, 4294901760
    %349 = vmatmul.mubr.f32.gmra.mrb[0].mxu0 %v348
    %v350 = vpop.f32.mrb[0].mxu0
    %v351 = vadd.f32 %v276, %v350
    %v352 = vpop.f32.mrb[0].mxu0
    %353 = vdwg.mxu0
    %354 = vmatprep.subr.mxu0 0.0
    %v355 = vand.u32 %v35, 4294901760
    %v356 = vsub.f32 %v35, %v355
    %v357 = vand.u32 %v356, 4294901760
    %358 = vmatpush1.msra.mxu0 %v357
    %359 = vmatprep.subr.mxu0 0.0
    %v360 = vand.u32 %v36, 4294901760
    %v361 = vsub.f32 %v36, %v360
    %v362 = vand.u32 %v361, 4294901760
    %363 = vmatpush1.msra.mxu0 %v362
    %364 = vmatprep.subr.mxu0 0.0
    %365 = vmatpush1.msra.mxu0 0.0
    %366 = vmatprep.subr.mxu0 0.0
    %367 = vmatpush1.msra.mxu0 0.0
    %368 = vmatprep.subr.mxu0 0.0
    %369 = vmatpush1.msra.mxu0 0.0
    %370 = vmatprep.subr.mxu0 0.0
    %371 = vmatpush1.msra.mxu0 0.0
    %372 = vmatprep.subr.mxu0 0.0
    %373 = vmatpush1.msra.mxu0 0.0
    %374 = vmatprep.subr.mxu0 0.0
    %375 = vmatpush1.msra.mxu0 0.0
    %376 = vmatprep.subr.mxu0 0.0
    %377 = vmatpush1.msra.mxu0 0.0
    %378 = vmatprep.subr.mxu0 0.0
    %379 = vmatpush1.msra.mxu0 0.0
    %380 = vmatprep.subr.mxu0 0.0
    %381 = vmatpush1.msra.mxu0 0.0
    %382 = vmatprep.subr.mxu0 0.0
    %383 = vmatpush1.msra.mxu0 0.0
    %384 = vmatprep.subr.mxu0 0.0
    %385 = vmatpush1.msra.mxu0 0.0
    %386 = vmatprep.subr.mxu0 0.0
    %387 = vmatpush1.msra.mxu0 0.0
    %388 = vmatprep.subr.mxu0 0.0
    %389 = vmatpush1.msra.mxu0 0.0
    %390 = vmatprep.subr.mxu0 0.0
    %391 = vmatpush1.msra.mxu0 0.0
    %392 = vmatprep.subr.mxu0 0.0
    %393 = vmatpush1.msra.mxu0 0.0
    %394 = vmatprep.subr.mxu0 0.0
    %395 = vmatpush1.msra.mxu0 0.0
    %396 = vmatprep.subr.mxu0 0.0
    %397 = vmatpush1.msra.mxu0 0.0
    %398 = vmatprep.subr.mxu0 0.0
    %399 = vmatpush1.msra.mxu0 0.0
    %400 = vmatprep.subr.mxu0 0.0
    %401 = vmatpush1.msra.mxu0 0.0
    %402 = vmatprep.subr.mxu0 0.0
    %403 = vmatpush1.msra.mxu0 0.0
    %404 = vmatprep.subr.mxu0 0.0
    %405 = vmatpush1.msra.mxu0 0.0
    %406 = vmatprep.subr.mxu0 0.0
    %407 = vmatpush1.msra.mxu0 0.0
    %408 = vmatprep.subr.mxu0 0.0
    %409 = vmatpush1.msra.mxu0 0.0
    %410 = vmatprep.subr.mxu0 0.0
    %411 = vmatpush1.msra.mxu0 0.0
    %412 = vmatprep.subr.mxu0 0.0
    %413 = vmatpush1.msra.mxu0 0.0
    %414 = vmatprep.subr.mxu0 0.0
    %415 = vmatpush1.msra.mxu0 0.0
    %416 = vmatprep.subr.mxu0 0.0
    %417 = vmatpush1.msra.mxu0 0.0
    %418 = vmatprep.subr.mxu0 0.0
    %419 = vmatpush1.msra.mxu0 0.0
    %420 = vmatprep.subr.mxu0 0.0
    %421 = vmatpush1.msra.mxu0 0.0
    %422 = vmatprep.subr.mxu0 0.0
    %423 = vmatpush1.msra.mxu0 0.0
    %424 = vmatprep.mubr.f32.mxu0 0.0
    %v425 = vand.u32 %v43, 4294901760
    %426 = vmatmul.mubr.f32.gmra.mrb[0].mxu0 %v425
    %v427 = vpop.f32.mrb[0].mxu0
    %v428 = vadd.f32 %v351, %v427
    %v429 = vpop.f32.mrb[0].mxu0
    %430 = vdwg.mxu0
    %431 = vmatprep.subr.mxu0 0.0
    %v432 = vand.u32 %v35, 4294901760
    %433 = vmatpush1.msra.mxu0 %v432
    %434 = vmatprep.subr.mxu0 0.0
    %v435 = vand.u32 %v36, 4294901760
    %436 = vmatpush1.msra.mxu0 %v435
    %437 = vmatprep.subr.mxu0 0.0
    %438 = vmatpush1.msra.mxu0 0.0
    %439 = vmatprep.subr.mxu0 0.0
    %440 = vmatpush1.msra.mxu0 0.0
    %441 = vmatprep.subr.mxu0 0.0
    %442 = vmatpush1.msra.mxu0 0.0
    %443 = vmatprep.subr.mxu0 0.0
    %444 = vmatpush1.msra.mxu0 0.0
    %445 = vmatprep.subr.mxu0 0.0
    %446 = vmatpush1.msra.mxu0 0.0
    %447 = vmatprep.subr.mxu0 0.0
    %448 = vmatpush1.msra.mxu0 0.0
    %449 = vmatprep.subr.mxu0 0.0
    %450 = vmatpush1.msra.mxu0 0.0
    %451 = vmatprep.subr.mxu0 0.0
    %452 = vmatpush1.msra.mxu0 0.0
    %453 = vmatprep.subr.mxu0 0.0
    %454 = vmatpush1.msra.mxu0 0.0
    %455 = vmatprep.subr.mxu0 0.0
    %456 = vmatpush1.msra.mxu0 0.0
    %457 = vmatprep.subr.mxu0 0.0
    %458 = vmatpush1.msra.mxu0 0.0
    %459 = vmatprep.subr.mxu0 0.0
    %460 = vmatpush1.msra.mxu0 0.0
    %461 = vmatprep.subr.mxu0 0.0
    %462 = vmatpush1.msra.mxu0 0.0
    %463 = vmatprep.subr.mxu0 0.0
    %464 = vmatpush1.msra.mxu0 0.0
    %465 = vmatprep.subr.mxu0 0.0
    %466 = vmatpush1.msra.mxu0 0.0
    %467 = vmatprep.subr.mxu0 0.0
    %468 = vmatpush1.msra.mxu0 0.0
    %469 = vmatprep.subr.mxu0 0.0
    %470 = vmatpush1.msra.mxu0 0.0
    %471 = vmatprep.subr.mxu0 0.0
    %472 = vmatpush1.msra.mxu0 0.0
    %473 = vmatprep.subr.mxu0 0.0
    %474 = vmatpush1.msra.mxu0 0.0
    %475 = vmatprep.subr.mxu0 0.0
    %476 = vmatpush1.msra.mxu0 0.0
    %477 = vmatprep.subr.mxu0 0.0
    %478 = vmatpush1.msra.mxu0 0.0
    %479 = vmatprep.subr.mxu0 0.0
    %480 = vmatpush1.msra.mxu0 0.0
    %481 = vmatprep.subr.mxu0 0.0
    %482 = vmatpush1.msra.mxu0 0.0
    %483 = vmatprep.subr.mxu0 0.0
    %484 = vmatpush1.msra.mxu0 0.0
    %485 = vmatprep.subr.mxu0 0.0
    %486 = vmatpush1.msra.mxu0 0.0
    %487 = vmatprep.subr.mxu0 0.0
    %488 = vmatpush1.msra.mxu0 0.0
    %489 = vmatprep.subr.mxu0 0.0
    %490 = vmatpush1.msra.mxu0 0.0
    %491 = vmatprep.subr.mxu0 0.0
    %492 = vmatpush1.msra.mxu0 0.0
    %493 = vmatprep.subr.mxu0 0.0
    %494 = vmatpush1.msra.mxu0 0.0
    %495 = vmatprep.subr.mxu0 0.0
    %496 = vmatpush1.msra.mxu0 0.0
    %497 = vmatprep.mubr.f32.mxu0 0.0
    %v498 = vand.u32 %v43, 4294901760
    %499 = vmatmul.mubr.f32.gmra.mrb[0].mxu0 %v498
    %v500 = vpop.f32.mrb[0].mxu0
    %v501 = vadd.f32 %v428, %v500
    %v502 = vpop.f32.mrb[0].mxu0
    %503 = vdwg.mxu0
    %v504 = vld [vmem:[#allocation2] sm:$0xff]
    %v505 = vld [vmem:[#allocation2 + $0x8] sm:$0xff]
    %v506 = vld [vmem:[#allocation2 + $0x10] sm:$0xff]
    %v507 = vld [vmem:[#allocation2 + $0x18] sm:$0xff]
    %v508 = vld [vmem:[#allocation2 + $0x20] sm:$0xff]
    %v509 = vld [vmem:[#allocation2 + $0x28] sm:$0xff]
    %v510 = vld [vmem:[#allocation2 + $0x30] sm:$0xff]
    %v511 = vld [vmem:[#allocation2 + $0x38] sm:$0xff]
    %v512 = vld [vmem:[#allocation2 + $0x40] sm:$0xff]
    %v513 = vld [vmem:[#allocation2 + $0x48] sm:$0xff]
    %v514 = vld [vmem:[#allocation2 + $0x50] sm:$0xff]
    %v515 = vld [vmem:[#allocation2 + $0x58] sm:$0xff]
    %v516 = vld [vmem:[#allocation2 + $0x60] sm:$0xff]
    %v517 = vld [vmem:[#allocation2 + $0x68] sm:$0xff]
    %v518 = vld [vmem:[#allocation2 + $0x70] sm:$0xff]
    %v519 = vld [vmem:[#allocation2 + $0x78] sm:$0xff]
    %520 = vmatprep.subr.mxu0 0.0
    %v521 = vand.u32 %v504, 4294901760
    %522 = vmatpush1.msra.mxu0 %v521
    %523 = vmatprep.subr.mxu0 0.0
    %v524 = vand.u32 %v505, 4294901760
    %525 = vmatpush1.msra.mxu0 %v524
    %526 = vmatprep.subr.mxu0 0.0
    %v527 = vand.u32 %v506, 4294901760
    %528 = vmatpush1.msra.mxu0 %v527
    %529 = vmatprep.subr.mxu0 0.0
    %v530 = vand.u32 %v507, 4294901760
    %531 = vmatpush1.msra.mxu0 %v530
    %532 = vmatprep.subr.mxu0 0.0
    %v533 = vand.u32 %v508, 4294901760
    %534 = vmatpush1.msra.mxu0 %v533
    %535 = vmatprep.subr.mxu0 0.0
    %v536 = vand.u32 %v509, 4294901760
    %537 = vmatpush1.msra.mxu0 %v536
    %538 = vmatprep.subr.mxu0 0.0
    %v539 = vand.u32 %v510, 4294901760
    %540 = vmatpush1.msra.mxu0 %v539
    %541 = vmatprep.subr.mxu0 0.0
    %v542 = vand.u32 %v511, 4294901760
    %543 = vmatpush1.msra.mxu0 %v542
    %544 = vmatprep.subr.mxu0 0.0
    %v545 = vand.u32 %v512, 4294901760
    %546 = vmatpush1.msra.mxu0 %v545
    %547 = vmatprep.subr.mxu0 0.0
    %v548 = vand.u32 %v513, 4294901760
    %549 = vmatpush1.msra.mxu0 %v548
    %550 = vmatprep.subr.mxu0 0.0
    %v551 = vand.u32 %v514, 4294901760
    %552 = vmatpush1.msra.mxu0 %v551
    %553 = vmatprep.subr.mxu0 0.0
    %v554 = vand.u32 %v515, 4294901760
    %555 = vmatpush1.msra.mxu0 %v554
    %556 = vmatprep.subr.mxu0 0.0
    %v557 = vand.u32 %v516, 4294901760
    %558 = vmatpush1.msra.mxu0 %v557
    %559 = vmatprep.subr.mxu0 0.0
    %v560 = vand.u32 %v517, 4294901760
    %561 = vmatpush1.msra.mxu0 %v560
    %562 = vmatprep.subr.mxu0 0.0
    %v563 = vand.u32 %v518, 4294901760
    %564 = vmatpush1.msra.mxu0 %v563
    %565 = vmatprep.subr.mxu0 0.0
    %v566 = vand.u32 %v519, 4294901760
    %567 = vmatpush1.msra.mxu0 %v566
    %568 = vmatprep.subr.mxu0 0.0
    %569 = vmatpush1.msra.mxu0 0.0
    %570 = vmatprep.subr.mxu0 0.0
    %571 = vmatpush1.msra.mxu0 0.0
    %572 = vmatprep.subr.mxu0 0.0
    %573 = vmatpush1.msra.mxu0 0.0
    %574 = vmatprep.subr.mxu0 0.0
    %575 = vmatpush1.msra.mxu0 0.0
    %576 = vmatprep.subr.mxu0 0.0
    %577 = vmatpush1.msra.mxu0 0.0
    %578 = vmatprep.subr.mxu0 0.0
    %579 = vmatpush1.msra.mxu0 0.0
    %580 = vmatprep.subr.mxu0 0.0
    %581 = vmatpush1.msra.mxu0 0.0
    %582 = vmatprep.subr.mxu0 0.0
    %583 = vmatpush1.msra.mxu0 0.0
    %584 = vmatprep.subr.mxu0 0.0
    %585 = vmatpush1.msra.mxu0 0.0
    %586 = vmatprep.subr.mxu0 0.0
    %587 = vmatpush1.msra.mxu0 0.0
    %588 = vmatprep.subr.mxu0 0.0
    %589 = vmatpush1.msra.mxu0 0.0
    %590 = vmatprep.subr.mxu0 0.0
    %591 = vmatpush1.msra.mxu0 0.0
    %592 = vmatprep.subr.mxu0 0.0
    %593 = vmatpush1.msra.mxu0 0.0
    %594 = vmatprep.subr.mxu0 0.0
    %595 = vmatpush1.msra.mxu0 0.0
    %596 = vmatprep.subr.mxu0 0.0
    %597 = vmatpush1.msra.mxu0 0.0
    %598 = vmatprep.subr.mxu0 0.0
    %599 = vmatpush1.msra.mxu0 0.0
    %600 = vmatprep.mubr.f32.mxu0 0.0
    %v601 = vand.u32 %v501, 4294901760
    %v602 = vsub.f32 %v501, %v601
    %v603 = vand.u32 %v602, 4294901760
    %v604 = vsub.f32 %v602, %v603
    %v605 = vand.u32 %v604, 4294901760
    %606 = vmatmul.mubr.f32.gmra.mrb[0].mxu0 %v605
    %v607 = vpop.f32.mrb[0].mxu0
    %v608 = vadd.f32 0.0, %v607
    %v609 = vpop.f32.mrb[0].mxu0
    %610 = vdwg.mxu0
    %611 = vmatprep.subr.mxu0 0.0
    %v612 = vand.u32 %v504, 4294901760
    %v613 = vsub.f32 %v504, %v612
    %v614 = vand.u32 %v613, 4294901760
    %v615 = vsub.f32 %v613, %v614
    %v616 = vand.u32 %v615, 4294901760
    %617 = vmatpush1.msra.mxu0 %v616
    %618 = vmatprep.subr.mxu0 0.0
    %v619 = vand.u32 %v505, 4294901760
    %v620 = vsub.f32 %v505, %v619
    %v621 = vand.u32 %v620, 4294901760
    %v622 = vsub.f32 %v620, %v621
    %v623 = vand.u32 %v622, 4294901760
    %624 = vmatpush1.msra.mxu0 %v623
    %625 = vmatprep.subr.mxu0 0.0
    %v626 = vand.u32 %v506, 4294901760
    %v627 = vsub.f32 %v506, %v626
    %v628 = vand.u32 %v627, 4294901760
    %v629 = vsub.f32 %v627, %v628
    %v630 = vand.u32 %v629, 4294901760
    %631 = vmatpush1.msra.mxu0 %v630
    %632 = vmatprep.subr.mxu0 0.0
    %v633 = vand.u32 %v507, 4294901760
    %v634 = vsub.f32 %v507, %v633
    %v635 = vand.u32 %v634, 4294901760
    %v636 = vsub.f32 %v634, %v635
    %v637 = vand.u32 %v636, 4294901760
    %638 = vmatpush1.msra.mxu0 %v637
    %639 = vmatprep.subr.mxu0 0.0
    %v640 = vand.u32 %v508, 4294901760
    %v641 = vsub.f32 %v508, %v640
    %v642 = vand.u32 %v641, 4294901760
    %v643 = vsub.f32 %v641, %v642
    %v644 = vand.u32 %v643, 4294901760
    %645 = vmatpush1.msra.mxu0 %v644
    %646 = vmatprep.subr.mxu0 0.0
    %v647 = vand.u32 %v509, 4294901760
    %v648 = vsub.f32 %v509, %v647
    %v649 = vand.u32 %v648, 4294901760
    %v650 = vsub.f32 %v648, %v649
    %v651 = vand.u32 %v650, 4294901760
    %652 = vmatpush1.msra.mxu0 %v651
    %653 = vmatprep.subr.mxu0 0.0
    %v654 = vand.u32 %v510, 4294901760
    %v655 = vsub.f32 %v510, %v654
    %v656 = vand.u32 %v655, 4294901760
    %v657 = vsub.f32 %v655, %v656
    %v658 = vand.u32 %v657, 4294901760
    %659 = vmatpush1.msra.mxu0 %v658
    %660 = vmatprep.subr.mxu0 0.0
    %v661 = vand.u32 %v511, 4294901760
    %v662 = vsub.f32 %v511, %v661
    %v663 = vand.u32 %v662, 4294901760
    %v664 = vsub.f32 %v662, %v663
    %v665 = vand.u32 %v664, 4294901760
    %666 = vmatpush1.msra.mxu0 %v665
    %667 = vmatprep.subr.mxu0 0.0
    %v668 = vand.u32 %v512, 4294901760
    %v669 = vsub.f32 %v512, %v668
    %v670 = vand.u32 %v669, 4294901760
    %v671 = vsub.f32 %v669, %v670
    %v672 = vand.u32 %v671, 4294901760
    %673 = vmatpush1.msra.mxu0 %v672
    %674 = vmatprep.subr.mxu0 0.0
    %v675 = vand.u32 %v513, 4294901760
    %v676 = vsub.f32 %v513, %v675
    %v677 = vand.u32 %v676, 4294901760
    %v678 = vsub.f32 %v676, %v677
    %v679 = vand.u32 %v678, 4294901760
    %680 = vmatpush1.msra.mxu0 %v679
    %681 = vmatprep.subr.mxu0 0.0
    %v682 = vand.u32 %v514, 4294901760
    %v683 = vsub.f32 %v514, %v682
    %v684 = vand.u32 %v683, 4294901760
    %v685 = vsub.f32 %v683, %v684
    %v686 = vand.u32 %v685, 4294901760
    %687 = vmatpush1.msra.mxu0 %v686
    %688 = vmatprep.subr.mxu0 0.0
    %v689 = vand.u32 %v515, 4294901760
    %v690 = vsub.f32 %v515, %v689
    %v691 = vand.u32 %v690, 4294901760
    %v692 = vsub.f32 %v690, %v691
    %v693 = vand.u32 %v692, 4294901760
    %694 = vmatpush1.msra.mxu0 %v693
    %695 = vmatprep.subr.mxu0 0.0
    %v696 = vand.u32 %v516, 4294901760
    %v697 = vsub.f32 %v516, %v696
    %v698 = vand.u32 %v697, 4294901760
    %v699 = vsub.f32 %v697, %v698
    %v700 = vand.u32 %v699, 4294901760
    %701 = vmatpush1.msra.mxu0 %v700
    %702 = vmatprep.subr.mxu0 0.0
    %v703 = vand.u32 %v517, 4294901760
    %v704 = vsub.f32 %v517, %v703
    %v705 = vand.u32 %v704, 4294901760
    %v706 = vsub.f32 %v704, %v705
    %v707 = vand.u32 %v706, 4294901760
    %708 = vmatpush1.msra.mxu0 %v707
    %709 = vmatprep.subr.mxu0 0.0
    %v710 = vand.u32 %v518, 4294901760
    %v711 = vsub.f32 %v518, %v710
    %v712 = vand.u32 %v711, 4294901760
    %v713 = vsub.f32 %v711, %v712
    %v714 = vand.u32 %v713, 4294901760
    %715 = vmatpush1.msra.mxu0 %v714
    %716 = vmatprep.subr.mxu0 0.0
    %v717 = vand.u32 %v519, 4294901760
    %v718 = vsub.f32 %v519, %v717
    %v719 = vand.u32 %v718, 4294901760
    %v720 = vsub.f32 %v718, %v719
    %v721 = vand.u32 %v720, 4294901760
    %722 = vmatpush1.msra.mxu0 %v721
    %723 = vmatprep.subr.mxu0 0.0
    %724 = vmatpush1.msra.mxu0 0.0
    %725 = vmatprep.subr.mxu0 0.0
    %726 = vmatpush1.msra.mxu0 0.0
    %727 = vmatprep.subr.mxu0 0.0
    %728 = vmatpush1.msra.mxu0 0.0
    %729 = vmatprep.subr.mxu0 0.0
    %730 = vmatpush1.msra.mxu0 0.0
    %731 = vmatprep.subr.mxu0 0.0
    %732 = vmatpush1.msra.mxu0 0.0
    %733 = vmatprep.subr.mxu0 0.0
    %734 = vmatpush1.msra.mxu0 0.0
    %735 = vmatprep.subr.mxu0 0.0
    %736 = vmatpush1.msra.mxu0 0.0
    %737 = vmatprep.subr.mxu0 0.0
    %738 = vmatpush1.msra.mxu0 0.0
    %739 = vmatprep.subr.mxu0 0.0
    %740 = vmatpush1.msra.mxu0 0.0
    %741 = vmatprep.subr.mxu0 0.0
    %742 = vmatpush1.msra.mxu0 0.0
    %743 = vmatprep.subr.mxu0 0.0
    %744 = vmatpush1.msra.mxu0 0.0
    %745 = vmatprep.subr.mxu0 0.0
    %746 = vmatpush1.msra.mxu0 0.0
    %747 = vmatprep.subr.mxu0 0.0
    %748 = vmatpush1.msra.mxu0 0.0
    %749 = vmatprep.subr.mxu0 0.0
    %750 = vmatpush1.msra.mxu0 0.0
    %751 = vmatprep.subr.mxu0 0.0
    %752 = vmatpush1.msra.mxu0 0.0
    %753 = vmatprep.subr.mxu0 0.0
    %754 = vmatpush1.msra.mxu0 0.0
    %755 = vmatprep.mubr.f32.mxu0 0.0
    %v756 = vand.u32 %v501, 4294901760
    %757 = vmatmul.mubr.f32.gmra.mrb[0].mxu0 %v756
    %v758 = vpop.f32.mrb[0].mxu0
    %v759 = vadd.f32 %v608, %v758
    %v760 = vpop.f32.mrb[0].mxu0
    %761 = vdwg.mxu0
    %762 = vmatprep.subr.mxu0 0.0
    %v763 = vand.u32 %v504, 4294901760
    %v764 = vsub.f32 %v504, %v763
    %765 = vmatpush1.msra.mxu0 %v764
    %766 = vmatprep.subr.mxu0 0.0
    %v767 = vand.u32 %v505, 4294901760
    %v768 = vsub.f32 %v505, %v767
    %769 = vmatpush1.msra.mxu0 %v768
    %770 = vmatprep.subr.mxu0 0.0
    %v771 = vand.u32 %v506, 4294901760
    %v772 = vsub.f32 %v506, %v771
    %773 = vmatpush1.msra.mxu0 %v772
    %774 = vmatprep.subr.mxu0 0.0
    %v775 = vand.u32 %v507, 4294901760
    %v776 = vsub.f32 %v507, %v775
    %777 = vmatpush1.msra.mxu0 %v776
    %778 = vmatprep.subr.mxu0 0.0
    %v779 = vand.u32 %v508, 4294901760
    %v780 = vsub.f32 %v508, %v779
    %781 = vmatpush1.msra.mxu0 %v780
    %782 = vmatprep.subr.mxu0 0.0
    %v783 = vand.u32 %v509, 4294901760
    %v784 = vsub.f32 %v509, %v783
    %785 = vmatpush1.msra.mxu0 %v784
    %786 = vmatprep.subr.mxu0 0.0
    %v787 = vand.u32 %v510, 4294901760
    %v788 = vsub.f32 %v510, %v787
    %789 = vmatpush1.msra.mxu0 %v788
    %790 = vmatprep.subr.mxu0 0.0
    %v791 = vand.u32 %v511, 4294901760
    %v792 = vsub.f32 %v511, %v791
    %793 = vmatpush1.msra.mxu0 %v792
    %794 = vmatprep.subr.mxu0 0.0
    %v795 = vand.u32 %v512, 4294901760
    %v796 = vsub.f32 %v512, %v795
    %797 = vmatpush1.msra.mxu0 %v796
    %798 = vmatprep.subr.mxu0 0.0
    %v799 = vand.u32 %v513, 4294901760
    %v800 = vsub.f32 %v513, %v799
    %801 = vmatpush1.msra.mxu0 %v800
    %802 = vmatprep.subr.mxu0 0.0
    %v803 = vand.u32 %v514, 4294901760
    %v804 = vsub.f32 %v514, %v803
    %805 = vmatpush1.msra.mxu0 %v804
    %806 = vmatprep.subr.mxu0 0.0
    %v807 = vand.u32 %v515, 4294901760
    %v808 = vsub.f32 %v515, %v807
    %809 = vmatpush1.msra.mxu0 %v808
    %810 = vmatprep.subr.mxu0 0.0
    %v811 = vand.u32 %v516, 4294901760
    %v812 = vsub.f32 %v516, %v811
    %813 = vmatpush1.msra.mxu0 %v812
    %814 = vmatprep.subr.mxu0 0.0
    %v815 = vand.u32 %v517, 4294901760
    %v816 = vsub.f32 %v517, %v815
    %817 = vmatpush1.msra.mxu0 %v816
    %818 = vmatprep.subr.mxu0 0.0
    %v819 = vand.u32 %v518, 4294901760
    %v820 = vsub.f32 %v518, %v819
    %821 = vmatpush1.msra.mxu0 %v820
    %822 = vmatprep.subr.mxu0 0.0
    %v823 = vand.u32 %v519, 4294901760
    %v824 = vsub.f32 %v519, %v823
    %825 = vmatpush1.msra.mxu0 %v824
    %826 = vmatprep.subr.mxu0 0.0
    %827 = vmatpush1.msra.mxu0 0.0
    %828 = vmatprep.subr.mxu0 0.0
    %829 = vmatpush1.msra.mxu0 0.0
    %830 = vmatprep.subr.mxu0 0.0
    %831 = vmatpush1.msra.mxu0 0.0
    %832 = vmatprep.subr.mxu0 0.0
    %833 = vmatpush1.msra.mxu0 0.0
    %834 = vmatprep.subr.mxu0 0.0
    %835 = vmatpush1.msra.mxu0 0.0
    %836 = vmatprep.subr.mxu0 0.0
    %837 = vmatpush1.msra.mxu0 0.0
    %838 = vmatprep.subr.mxu0 0.0
    %839 = vmatpush1.msra.mxu0 0.0
    %840 = vmatprep.subr.mxu0 0.0
    %841 = vmatpush1.msra.mxu0 0.0
    %842 = vmatprep.subr.mxu0 0.0
    %843 = vmatpush1.msra.mxu0 0.0
    %844 = vmatprep.subr.mxu0 0.0
    %845 = vmatpush1.msra.mxu0 0.0
    %846 = vmatprep.subr.mxu0 0.0
    %847 = vmatpush1.msra.mxu0 0.0
    %848 = vmatprep.subr.mxu0 0.0
    %849 = vmatpush1.msra.mxu0 0.0
    %850 = vmatprep.subr.mxu0 0.0
    %851 = vmatpush1.msra.mxu0 0.0
    %852 = vmatprep.subr.mxu0 0.0
    %853 = vmatpush1.msra.mxu0 0.0
    %854 = vmatprep.subr.mxu0 0.0
    %855 = vmatpush1.msra.mxu0 0.0
    %856 = vmatprep.subr.mxu0 0.0
    %857 = vmatpush1.msra.mxu0 0.0
    %858 = vmatprep.mubr.f32.mxu0 0.0
    %v859 = vand.u32 %v501, 4294901760
    %v860 = vsub.f32 %v501, %v859
    %861 = vmatmul.mubr.f32.gmra.mrb[0].mxu0 %v860
    %v862 = vpop.f32.mrb[0].mxu0
    %v863 = vadd.f32 %v759, %v862
    %v864 = vpop.f32.mrb[0].mxu0
    %865 = vdwg.mxu0
    %866 = vmatprep.subr.mxu0 0.0
    %v867 = vand.u32 %v504, 4294901760
    %868 = vmatpush1.msra.mxu0 %v867
    %869 = vmatprep.subr.mxu0 0.0
    %v870 = vand.u32 %v505, 4294901760
    %871 = vmatpush1.msra.mxu0 %v870
    %872 = vmatprep.subr.mxu0 0.0
    %v873 = vand.u32 %v506, 4294901760
    %874 = vmatpush1.msra.mxu0 %v873
    %875 = vmatprep.subr.mxu0 0.0
    %v876 = vand.u32 %v507, 4294901760
    %877 = vmatpush1.msra.mxu0 %v876
    %878 = vmatprep.subr.mxu0 0.0
    %v879 = vand.u32 %v508, 4294901760
    %880 = vmatpush1.msra.mxu0 %v879
    %881 = vmatprep.subr.mxu0 0.0
    %v882 = vand.u32 %v509, 4294901760
    %883 = vmatpush1.msra.mxu0 %v882
    %884 = vmatprep.subr.mxu0 0.0
    %v885 = vand.u32 %v510, 4294901760
    %886 = vmatpush1.msra.mxu0 %v885
    %887 = vmatprep.subr.mxu0 0.0
    %v888 = vand.u32 %v511, 4294901760
    %889 = vmatpush1.msra.mxu0 %v888
    %890 = vmatprep.subr.mxu0 0.0
    %v891 = vand.u32 %v512, 4294901760
    %892 = vmatpush1.msra.mxu0 %v891
    %893 = vmatprep.subr.mxu0 0.0
    %v894 = vand.u32 %v513, 4294901760
    %895 = vmatpush1.msra.mxu0 %v894
    %896 = vmatprep.subr.mxu0 0.0
    %v897 = vand.u32 %v514, 4294901760
    %898 = vmatpush1.msra.mxu0 %v897
    %899 = vmatprep.subr.mxu0 0.0
    %v900 = vand.u32 %v515, 4294901760
    %901 = vmatpush1.msra.mxu0 %v900
    %902 = vmatprep.subr.mxu0 0.0
    %v903 = vand.u32 %v516, 4294901760
    %904 = vmatpush1.msra.mxu0 %v903
    %905 = vmatprep.subr.mxu0 0.0
    %v906 = vand.u32 %v517, 4294901760
    %907 = vmatpush1.msra.mxu0 %v906
    %908 = vmatprep.subr.mxu0 0.0
    %v909 = vand.u32 %v518, 4294901760
    %910 = vmatpush1.msra.mxu0 %v909
    %911 = vmatprep.subr.mxu0 0.0
    %v912 = vand.u32 %v519, 4294901760
    %913 = vmatpush1.msra.mxu0 %v912
    %914 = vmatprep.subr.mxu0 0.0
    %915 = vmatpush1.msra.mxu0 0.0
    %916 = vmatprep.subr.mxu0 0.0
    %917 = vmatpush1.msra.mxu0 0.0
    %918 = vmatprep.subr.mxu0 0.0
    %919 = vmatpush1.msra.mxu0 0.0
    %920 = vmatprep.subr.mxu0 0.0
    %921 = vmatpush1.msra.mxu0 0.0
    %922 = vmatprep.subr.mxu0 0.0
    %923 = vmatpush1.msra.mxu0 0.0
    %924 = vmatprep.subr.mxu0 0.0
    %925 = vmatpush1.msra.mxu0 0.0
    %926 = vmatprep.subr.mxu0 0.0
    %927 = vmatpush1.msra.mxu0 0.0
    %928 = vmatprep.subr.mxu0 0.0
    %929 = vmatpush1.msra.mxu0 0.0
    %930 = vmatprep.subr.mxu0 0.0
    %931 = vmatpush1.msra.mxu0 0.0
    %932 = vmatprep.subr.mxu0 0.0
    %933 = vmatpush1.msra.mxu0 0.0
    %934 = vmatprep.subr.mxu0 0.0
    %935 = vmatpush1.msra.mxu0 0.0
    %936 = vmatprep.subr.mxu0 0.0
    %937 = vmatpush1.msra.mxu0 0.0
    %938 = vmatprep.subr.mxu0 0.0
    %939 = vmatpush1.msra.mxu0 0.0
    %940 = vmatprep.subr.mxu0 0.0
    %941 = vmatpush1.msra.mxu0 0.0
    %942 = vmatprep.subr.mxu0 0.0
    %943 = vmatpush1.msra.mxu0 0.0
    %944 = vmatprep.subr.mxu0 0.0
    %945 = vmatpush1.msra.mxu0 0.0
    %946 = vmatprep.mubr.f32.mxu0 0.0
    %v947 = vand.u32 %v501, 4294901760
    %v948 = vsub.f32 %v501, %v947
    %v949 = vand.u32 %v948, 4294901760
    %950 = vmatmul.mubr.f32.gmra.mrb[0].mxu0 %v949
    %v951 = vpop.f32.mrb[0].mxu0
    %v952 = vadd.f32 %v863, %v951
    %v953 = vpop.f32.mrb[0].mxu0
    %954 = vdwg.mxu0
    %955 = vmatprep.subr.mxu0 0.0
    %v956 = vand.u32 %v504, 4294901760
    %v957 = vsub.f32 %v504, %v956
    %v958 = vand.u32 %v957, 4294901760
    %959 = vmatpush1.msra.mxu0 %v958
    %960 = vmatprep.subr.mxu0 0.0
    %v961 = vand.u32 %v505, 4294901760
    %v962 = vsub.f32 %v505, %v961
    %v963 = vand.u32 %v962, 4294901760
    %964 = vmatpush1.msra.mxu0 %v963
    %965 = vmatprep.subr.mxu0 0.0
    %v966 = vand.u32 %v506, 4294901760
    %v967 = vsub.f32 %v506, %v966
    %v968 = vand.u32 %v967, 4294901760
    %969 = vmatpush1.msra.mxu0 %v968
    %970 = vmatprep.subr.mxu0 0.0
    %v971 = vand.u32 %v507, 4294901760
    %v972 = vsub.f32 %v507, %v971
    %v973 = vand.u32 %v972, 4294901760
    %974 = vmatpush1.msra.mxu0 %v973
    %975 = vmatprep.subr.mxu0 0.0
    %v976 = vand.u32 %v508, 4294901760
    %v977 = vsub.f32 %v508, %v976
    %v978 = vand.u32 %v977, 4294901760
    %979 = vmatpush1.msra.mxu0 %v978
    %980 = vmatprep.subr.mxu0 0.0
    %v981 = vand.u32 %v509, 4294901760
    %v982 = vsub.f32 %v509, %v981
    %v983 = vand.u32 %v982, 4294901760
    %984 = vmatpush1.msra.mxu0 %v983
    %985 = vmatprep.subr.mxu0 0.0
    %v986 = vand.u32 %v510, 4294901760
    %v987 = vsub.f32 %v510, %v986
    %v988 = vand.u32 %v987, 4294901760
    %989 = vmatpush1.msra.mxu0 %v988
    %990 = vmatprep.subr.mxu0 0.0
    %v991 = vand.u32 %v511, 4294901760
    %v992 = vsub.f32 %v511, %v991
    %v993 = vand.u32 %v992, 4294901760
    %994 = vmatpush1.msra.mxu0 %v993
    %995 = vmatprep.subr.mxu0 0.0
    %v996 = vand.u32 %v512, 4294901760
    %v997 = vsub.f32 %v512, %v996
    %v998 = vand.u32 %v997, 4294901760
    %999 = vmatpush1.msra.mxu0 %v998
    %1000 = vmatprep.subr.mxu0 0.0
    %v1001 = vand.u32 %v513, 4294901760
    %v1002 = vsub.f32 %v513, %v1001
    %v1003 = vand.u32 %v1002, 4294901760
    %1004 = vmatpush1.msra.mxu0 %v1003
    %1005 = vmatprep.subr.mxu0 0.0
    %v1006 = vand.u32 %v514, 4294901760
    %v1007 = vsub.f32 %v514, %v1006
    %v1008 = vand.u32 %v1007, 4294901760
    %1009 = vmatpush1.msra.mxu0 %v1008
    %1010 = vmatprep.subr.mxu0 0.0
    %v1011 = vand.u32 %v515, 4294901760
    %v1012 = vsub.f32 %v515, %v1011
    %v1013 = vand.u32 %v1012, 4294901760
    %1014 = vmatpush1.msra.mxu0 %v1013
    %1015 = vmatprep.subr.mxu0 0.0
    %v1016 = vand.u32 %v516, 4294901760
    %v1017 = vsub.f32 %v516, %v1016
    %v1018 = vand.u32 %v1017, 4294901760
    %1019 = vmatpush1.msra.mxu0 %v1018
    %1020 = vmatprep.subr.mxu0 0.0
    %v1021 = vand.u32 %v517, 4294901760
    %v1022 = vsub.f32 %v517, %v1021
    %v1023 = vand.u32 %v1022, 4294901760
    %1024 = vmatpush1.msra.mxu0 %v1023
    %1025 = vmatprep.subr.mxu0 0.0
    %v1026 = vand.u32 %v518, 4294901760
    %v1027 = vsub.f32 %v518, %v1026
    %v1028 = vand.u32 %v1027, 4294901760
    %1029 = vmatpush1.msra.mxu0 %v1028
    %1030 = vmatprep.subr.mxu0 0.0
    %v1031 = vand.u32 %v519, 4294901760
    %v1032 = vsub.f32 %v519, %v1031
    %v1033 = vand.u32 %v1032, 4294901760
    %1034 = vmatpush1.msra.mxu0 %v1033
    %1035 = vmatprep.subr.mxu0 0.0
    %1036 = vmatpush1.msra.mxu0 0.0
    %1037 = vmatprep.subr.mxu0 0.0
    %1038 = vmatpush1.msra.mxu0 0.0
    %1039 = vmatprep.subr.mxu0 0.0
    %1040 = vmatpush1.msra.mxu0 0.0
    %1041 = vmatprep.subr.mxu0 0.0
    %1042 = vmatpush1.msra.mxu0 0.0
    %1043 = vmatprep.subr.mxu0 0.0
    %1044 = vmatpush1.msra.mxu0 0.0
    %1045 = vmatprep.subr.mxu0 0.0
    %1046 = vmatpush1.msra.mxu0 0.0
    %1047 = vmatprep.subr.mxu0 0.0
    %1048 = vmatpush1.msra.mxu0 0.0
    %1049 = vmatprep.subr.mxu0 0.0
    %1050 = vmatpush1.msra.mxu0 0.0
    %1051 = vmatprep.subr.mxu0 0.0
    %1052 = vmatpush1.msra.mxu0 0.0
    %1053 = vmatprep.subr.mxu0 0.0
    %1054 = vmatpush1.msra.mxu0 0.0
    %1055 = vmatprep.subr.mxu0 0.0
    %1056 = vmatpush1.msra.mxu0 0.0
    %1057 = vmatprep.subr.mxu0 0.0
    %1058 = vmatpush1.msra.mxu0 0.0
    %1059 = vmatprep.subr.mxu0 0.0
    %1060 = vmatpush1.msra.mxu0 0.0
    %1061 = vmatprep.subr.mxu0 0.0
    %1062 = vmatpush1.msra.mxu0 0.0
    %1063 = vmatprep.subr.mxu0 0.0
    %1064 = vmatpush1.msra.mxu0 0.0
    %1065 = vmatprep.subr.mxu0 0.0
    %1066 = vmatpush1.msra.mxu0 0.0
    %1067 = vmatprep.mubr.f32.mxu0 0.0
    %v1068 = vand.u32 %v501, 4294901760
    %1069 = vmatmul.mubr.f32.gmra.mrb[0].mxu0 %v1068
    %v1070 = vpop.f32.mrb[0].mxu0
    %v1071 = vadd.f32 %v952, %v1070
    %v1072 = vpop.f32.mrb[0].mxu0
    %1073 = vdwg.mxu0
    %1074 = vmatprep.subr.mxu0 0.0
    %v1075 = vand.u32 %v504, 4294901760
    %1076 = vmatpush1.msra.mxu0 %v1075
    %1077 = vmatprep.subr.mxu0 0.0
    %v1078 = vand.u32 %v505, 4294901760
    %1079 = vmatpush1.msra.mxu0 %v1078
    %1080 = vmatprep.subr.mxu0 0.0
    %v1081 = vand.u32 %v506, 4294901760
    %1082 = vmatpush1.msra.mxu0 %v1081
    %1083 = vmatprep.subr.mxu0 0.0
    %v1084 = vand.u32 %v507, 4294901760
    %1085 = vmatpush1.msra.mxu0 %v1084
    %1086 = vmatprep.subr.mxu0 0.0
    %v1087 = vand.u32 %v508, 4294901760
    %1088 = vmatpush1.msra.mxu0 %v1087
    %1089 = vmatprep.subr.mxu0 0.0
    %v1090 = vand.u32 %v509, 4294901760
    %1091 = vmatpush1.msra.mxu0 %v1090
    %1092 = vmatprep.subr.mxu0 0.0
    %v1093 = vand.u32 %v510, 4294901760
    %1094 = vmatpush1.msra.mxu0 %v1093
    %1095 = vmatprep.subr.mxu0 0.0
    %v1096 = vand.u32 %v511, 4294901760
    %1097 = vmatpush1.msra.mxu0 %v1096
    %1098 = vmatprep.subr.mxu0 0.0
    %v1099 = vand.u32 %v512, 4294901760
    %1100 = vmatpush1.msra.mxu0 %v1099
    %1101 = vmatprep.subr.mxu0 0.0
    %v1102 = vand.u32 %v513, 4294901760
    %1103 = vmatpush1.msra.mxu0 %v1102
    %1104 = vmatprep.subr.mxu0 0.0
    %v1105 = vand.u32 %v514, 4294901760
    %1106 = vmatpush1.msra.mxu0 %v1105
    %1107 = vmatprep.subr.mxu0 0.0
    %v1108 = vand.u32 %v515, 4294901760
    %1109 = vmatpush1.msra.mxu0 %v1108
    %1110 = vmatprep.subr.mxu0 0.0
    %v1111 = vand.u32 %v516, 4294901760
    %1112 = vmatpush1.msra.mxu0 %v1111
    %1113 = vmatprep.subr.mxu0 0.0
    %v1114 = vand.u32 %v517, 4294901760
    %1115 = vmatpush1.msra.mxu0 %v1114
    %1116 = vmatprep.subr.mxu0 0.0
    %v1117 = vand.u32 %v518, 4294901760
    %1118 = vmatpush1.msra.mxu0 %v1117
    %1119 = vmatprep.subr.mxu0 0.0
    %v1120 = vand.u32 %v519, 4294901760
    %1121 = vmatpush1.msra.mxu0 %v1120
    %1122 = vmatprep.subr.mxu0 0.0
    %1123 = vmatpush1.msra.mxu0 0.0
    %1124 = vmatprep.subr.mxu0 0.0
    %1125 = vmatpush1.msra.mxu0 0.0
    %1126 = vmatprep.subr.mxu0 0.0
    %1127 = vmatpush1.msra.mxu0 0.0
    %1128 = vmatprep.subr.mxu0 0.0
    %1129 = vmatpush1.msra.mxu0 0.0
    %1130 = vmatprep.subr.mxu0 0.0
    %1131 = vmatpush1.msra.mxu0 0.0
    %1132 = vmatprep.subr.mxu0 0.0
    %1133 = vmatpush1.msra.mxu0 0.0
    %1134 = vmatprep.subr.mxu0 0.0
    %1135 = vmatpush1.msra.mxu0 0.0
    %1136 = vmatprep.subr.mxu0 0.0
    %1137 = vmatpush1.msra.mxu0 0.0
    %1138 = vmatprep.subr.mxu0 0.0
    %1139 = vmatpush1.msra.mxu0 0.0
    %1140 = vmatprep.subr.mxu0 0.0
    %1141 = vmatpush1.msra.mxu0 0.0
    %1142 = vmatprep.subr.mxu0 0.0
    %1143 = vmatpush1.msra.mxu0 0.0
    %1144 = vmatprep.subr.mxu0 0.0
    %1145 = vmatpush1.msra.mxu0 0.0
    %1146 = vmatprep.subr.mxu0 0.0
    %1147 = vmatpush1.msra.mxu0 0.0
    %1148 = vmatprep.subr.mxu0 0.0
    %1149 = vmatpush1.msra.mxu0 0.0
    %1150 = vmatprep.subr.mxu0 0.0
    %1151 = vmatpush1.msra.mxu0 0.0
    %1152 = vmatprep.subr.mxu0 0.0
    %1153 = vmatpush1.msra.mxu0 0.0
    %1154 = vmatprep.mubr.f32.mxu0 0.0
    %v1155 = vand.u32 %v501, 4294901760
    %1156 = vmatmul.mubr.f32.gmra.mrb[0].mxu0 %v1155
    %v1157 = vpop.f32.mrb[0].mxu0
    %v1158 = vadd.f32 %v1071, %v1157
    %v1159 = vpop.f32.mrb[0].mxu0
    %1160 = vdwg.mxu0
    %v1161 = vsub.f32 %v501, %v1158
    %v1162 = vmul.f32 %v1161, %v1161
    %1163 = vmatprep.subr.mxu0 0.0
    %v1164 = vand.u32 %v504, 4294901760
    %1165 = vmatpush1.msra.mxu0 %v1164
    %1166 = vmatprep.subr.mxu0 0.0
    %v1167 = vand.u32 %v505, 4294901760
    %1168 = vmatpush1.msra.mxu0 %v1167
    %1169 = vmatprep.subr.mxu0 0.0
    %v1170 = vand.u32 %v506, 4294901760
    %1171 = vmatpush1.msra.mxu0 %v1170
    %1172 = vmatprep.subr.mxu0 0.0
    %v1173 = vand.u32 %v507, 4294901760
    %1174 = vmatpush1.msra.mxu0 %v1173
    %1175 = vmatprep.subr.mxu0 0.0
    %v1176 = vand.u32 %v508, 4294901760
    %1177 = vmatpush1.msra.mxu0 %v1176
    %1178 = vmatprep.subr.mxu0 0.0
    %v1179 = vand.u32 %v509, 4294901760
    %1180 = vmatpush1.msra.mxu0 %v1179
    %1181 = vmatprep.subr.mxu0 0.0
    %v1182 = vand.u32 %v510, 4294901760
    %1183 = vmatpush1.msra.mxu0 %v1182
    %1184 = vmatprep.subr.mxu0 0.0
    %v1185 = vand.u32 %v511, 4294901760
    %1186 = vmatpush1.msra.mxu0 %v1185
    %1187 = vmatprep.subr.mxu0 0.0
    %v1188 = vand.u32 %v512, 4294901760
    %1189 = vmatpush1.msra.mxu0 %v1188
    %1190 = vmatprep.subr.mxu0 0.0
    %v1191 = vand.u32 %v513, 4294901760
    %1192 = vmatpush1.msra.mxu0 %v1191
    %1193 = vmatprep.subr.mxu0 0.0
    %v1194 = vand.u32 %v514, 4294901760
    %1195 = vmatpush1.msra.mxu0 %v1194
    %1196 = vmatprep.subr.mxu0 0.0
    %v1197 = vand.u32 %v515, 4294901760
    %1198 = vmatpush1.msra.mxu0 %v1197
    %1199 = vmatprep.subr.mxu0 0.0
    %v1200 = vand.u32 %v516, 4294901760
    %1201 = vmatpush1.msra.mxu0 %v1200
    %1202 = vmatprep.subr.mxu0 0.0
    %v1203 = vand.u32 %v517, 4294901760
    %1204 = vmatpush1.msra.mxu0 %v1203
    %1205 = vmatprep.subr.mxu0 0.0
    %v1206 = vand.u32 %v518, 4294901760
    %1207 = vmatpush1.msra.mxu0 %v1206
    %1208 = vmatprep.subr.mxu0 0.0
    %v1209 = vand.u32 %v519, 4294901760
    %1210 = vmatpush1.msra.mxu0 %v1209
    %1211 = vmatprep.subr.mxu0 0.0
    %1212 = vmatpush1.msra.mxu0 0.0
    %1213 = vmatprep.subr.mxu0 0.0
    %1214 = vmatpush1.msra.mxu0 0.0
    %1215 = vmatprep.subr.mxu0 0.0
    %1216 = vmatpush1.msra.mxu0 0.0
    %1217 = vmatprep.subr.mxu0 0.0
    %1218 = vmatpush1.msra.mxu0 0.0
    %1219 = vmatprep.subr.mxu0 0.0
    %1220 = vmatpush1.msra.mxu0 0.0
    %1221 = vmatprep.subr.mxu0 0.0
    %1222 = vmatpush1.msra.mxu0 0.0
    %1223 = vmatprep.subr.mxu0 0.0
    %1224 = vmatpush1.msra.mxu0 0.0
    %1225 = vmatprep.subr.mxu0 0.0
    %1226 = vmatpush1.msra.mxu0 0.0
    %1227 = vmatprep.subr.mxu0 0.0
    %1228 = vmatpush1.msra.mxu0 0.0
    %1229 = vmatprep.subr.mxu0 0.0
    %1230 = vmatpush1.msra.mxu0 0.0
    %1231 = vmatprep.subr.mxu0 0.0
    %1232 = vmatpush1.msra.mxu0 0.0
    %1233 = vmatprep.subr.mxu0 0.0
    %1234 = vmatpush1.msra.mxu0 0.0
    %1235 = vmatprep.subr.mxu0 0.0
    %1236 = vmatpush1.msra.mxu0 0.0
    %1237 = vmatprep.subr.mxu0 0.0
    %1238 = vmatpush1.msra.mxu0 0.0
    %1239 = vmatprep.subr.mxu0 0.0
    %1240 = vmatpush1.msra.mxu0 0.0
    %1241 = vmatprep.subr.mxu0 0.0
    %1242 = vmatpush1.msra.mxu0 0.0
    %1243 = vmatprep.mubr.f32.mxu0 0.0
    %v1244 = vand.u32 %v1162, 4294901760
    %v1245 = vsub.f32 %v1162, %v1244
    %v1246 = vand.u32 %v1245, 4294901760
    %v1247 = vsub.f32 %v1245, %v1246
    %v1248 = vand.u32 %v1247, 4294901760
    %1249 = vmatmul.mubr.f32.gmra.mrb[0].mxu0 %v1248
    %v1250 = vpop.f32.mrb[0].mxu0
    %v1251 = vadd.f32 1e-05, %v1250
    %v1252 = vpop.f32.mrb[0].mxu0
    %1253 = vdwg.mxu0
    %1254 = vmatprep.subr.mxu0 0.0
    %v1255 = vand.u32 %v504, 4294901760
    %v1256 = vsub.f32 %v504, %v1255
    %v1257 = vand.u32 %v1256, 4294901760
    %v1258 = vsub.f32 %v1256, %v1257
    %v1259 = vand.u32 %v1258, 4294901760
    %1260 = vmatpush1.msra.mxu0 %v1259
    %1261 = vmatprep.subr.mxu0 0.0
    %v1262 = vand.u32 %v505, 4294901760
    %v1263 = vsub.f32 %v505, %v1262
    %v1264 = vand.u32 %v1263, 4294901760
    %v1265 = vsub.f32 %v1263, %v1264
    %v1266 = vand.u32 %v1265, 4294901760
    %1267 = vmatpush1.msra.mxu0 %v1266
    %1268 = vmatprep.subr.mxu0 0.0
    %v1269 = vand.u32 %v506, 4294901760
    %v1270 = vsub.f32 %v506, %v1269
    %v1271 = vand.u32 %v1270, 4294901760
    %v1272 = vsub.f32 %v1270, %v1271
    %v1273 = vand.u32 %v1272, 4294901760
    %1274 = vmatpush1.msra.mxu0 %v1273
    %1275 = vmatprep.subr.mxu0 0.0
    %v1276 = vand.u32 %v507, 4294901760
    %v1277 = vsub.f32 %v507, %v1276
    %v1278 = vand.u32 %v1277, 4294901760
    %v1279 = vsub.f32 %v1277, %v1278
    %v1280 = vand.u32 %v1279, 4294901760
    %1281 = vmatpush1.msra.mxu0 %v1280
    %1282 = vmatprep.subr.mxu0 0.0
    %v1283 = vand.u32 %v508, 4294901760
    %v1284 = vsub.f32 %v508, %v1283
    %v1285 = vand.u32 %v1284, 4294901760
    %v1286 = vsub.f32 %v1284, %v1285
    %v1287 = vand.u32 %v1286, 4294901760
    %1288 = vmatpush1.msra.mxu0 %v1287
    %1289 = vmatprep.subr.mxu0 0.0
    %v1290 = vand.u32 %v509, 4294901760
    %v1291 = vsub.f32 %v509, %v1290
    %v1292 = vand.u32 %v1291, 4294901760
    %v1293 = vsub.f32 %v1291, %v1292
    %v1294 = vand.u32 %v1293, 4294901760
    %1295 = vmatpush1.msra.mxu0 %v1294
    %1296 = vmatprep.subr.mxu0 0.0
    %v1297 = vand.u32 %v510, 4294901760
    %v1298 = vsub.f32 %v510, %v1297
    %v1299 = vand.u32 %v1298, 4294901760
    %v1300 = vsub.f32 %v1298, %v1299
    %v1301 = vand.u32 %v1300, 4294901760
    %1302 = vmatpush1.msra.mxu0 %v1301
    %1303 = vmatprep.subr.mxu0 0.0
    %v1304 = vand.u32 %v511, 4294901760
    %v1305 = vsub.f32 %v511, %v1304
    %v1306 = vand.u32 %v1305, 4294901760
    %v1307 = vsub.f32 %v1305, %v1306
    %v1308 = vand.u32 %v1307, 4294901760
    %1309 = vmatpush1.msra.mxu0 %v1308
    %1310 = vmatprep.subr.mxu0 0.0
    %v1311 = vand.u32 %v512, 4294901760
    %v1312 = vsub.f32 %v512, %v1311
    %v1313 = vand.u32 %v1312, 4294901760
    %v1314 = vsub.f32 %v1312, %v1313
    %v1315 = vand.u32 %v1314, 4294901760
    %1316 = vmatpush1.msra.mxu0 %v1315
    %1317 = vmatprep.subr.mxu0 0.0
    %v1318 = vand.u32 %v513, 4294901760
    %v1319 = vsub.f32 %v513, %v1318
    %v1320 = vand.u32 %v1319, 4294901760
    %v1321 = vsub.f32 %v1319, %v1320
    %v1322 = vand.u32 %v1321, 4294901760
    %1323 = vmatpush1.msra.mxu0 %v1322
    %1324 = vmatprep.subr.mxu0 0.0
    %v1325 = vand.u32 %v514, 4294901760
    %v1326 = vsub.f32 %v514, %v1325
    %v1327 = vand.u32 %v1326, 4294901760
    %v1328 = vsub.f32 %v1326, %v1327
    %v1329 = vand.u32 %v1328, 4294901760
    %1330 = vmatpush1.msra.mxu0 %v1329
    %1331 = vmatprep.subr.mxu0 0.0
    %v1332 = vand.u32 %v515, 4294901760
    %v1333 = vsub.f32 %v515, %v1332
    %v1334 = vand.u32 %v1333, 4294901760
    %v1335 = vsub.f32 %v1333, %v1334
    %v1336 = vand.u32 %v1335, 4294901760
    %1337 = vmatpush1.msra.mxu0 %v1336
    %1338 = vmatprep.subr.mxu0 0.0
    %v1339 = vand.u32 %v516, 4294901760
    %v1340 = vsub.f32 %v516, %v1339
    %v1341 = vand.u32 %v1340, 4294901760
    %v1342 = vsub.f32 %v1340, %v1341
    %v1343 = vand.u32 %v1342, 4294901760
    %1344 = vmatpush1.msra.mxu0 %v1343
    %1345 = vmatprep.subr.mxu0 0.0
    %v1346 = vand.u32 %v517, 4294901760
    %v1347 = vsub.f32 %v517, %v1346
    %v1348 = vand.u32 %v1347, 4294901760
    %v1349 = vsub.f32 %v1347, %v1348
    %v1350 = vand.u32 %v1349, 4294901760
    %1351 = vmatpush1.msra.mxu0 %v1350
    %1352 = vmatprep.subr.mxu0 0.0
    %v1353 = vand.u32 %v518, 4294901760
    %v1354 = vsub.f32 %v518, %v1353
    %v1355 = vand.u32 %v1354, 4294901760
    %v1356 = vsub.f32 %v1354, %v1355
    %v1357 = vand.u32 %v1356, 4294901760
    %1358 = vmatpush1.msra.mxu0 %v1357
    %1359 = vmatprep.subr.mxu0 0.0
    %v1360 = vand.u32 %v519, 4294901760
    %v1361 = vsub.f32 %v519, %v1360
    %v1362 = vand.u32 %v1361, 4294901760
    %v1363 = vsub.f32 %v1361, %v1362
    %v1364 = vand.u32 %v1363, 4294901760
    %1365 = vmatpush1.msra.mxu0 %v1364
    %1366 = vmatprep.subr.mxu0 0.0
    %1367 = vmatpush1.msra.mxu0 0.0
    %1368 = vmatprep.subr.mxu0 0.0
    %1369 = vmatpush1.msra.mxu0 0.0
    %1370 = vmatprep.subr.mxu0 0.0
    %1371 = vmatpush1.msra.mxu0 0.0
    %1372 = vmatprep.subr.mxu0 0.0
    %1373 = vmatpush1.msra.mxu0 0.0
    %1374 = vmatprep.subr.mxu0 0.0
    %1375 = vmatpush1.msra.mxu0 0.0
    %1376 = vmatprep.subr.mxu0 0.0
    %1377 = vmatpush1.msra.mxu0 0.0
    %1378 = vmatprep.subr.mxu0 0.0
    %1379 = vmatpush1.msra.mxu0 0.0
    %1380 = vmatprep.subr.mxu0 0.0
    %1381 = vmatpush1.msra.mxu0 0.0
    %1382 = vmatprep.subr.mxu0 0.0
    %1383 = vmatpush1.msra.mxu0 0.0
    %1384 = vmatprep.subr.mxu0 0.0
    %1385 = vmatpush1.msra.mxu0 0.0
    %1386 = vmatprep.subr.mxu0 0.0
    %1387 = vmatpush1.msra.mxu0 0.0
    %1388 = vmatprep.subr.mxu0 0.0
    %1389 = vmatpush1.msra.mxu0 0.0
    %1390 = vmatprep.subr.mxu0 0.0
    %1391 = vmatpush1.msra.mxu0 0.0
    %1392 = vmatprep.subr.mxu0 0.0
    %1393 = vmatpush1.msra.mxu0 0.0
    %1394 = vmatprep.subr.mxu0 0.0
    %1395 = vmatpush1.msra.mxu0 0.0
    %1396 = vmatprep.subr.mxu0 0.0
    %1397 = vmatpush1.msra.mxu0 0.0
    %1398 = vmatprep.mubr.f32.mxu0 0.0
    %v1399 = vand.u32 %v1162, 4294901760
    %1400 = vmatmul.mubr.f32.gmra.mrb[0].mxu0 %v1399
    %v1401 = vpop.f32.mrb[0].mxu0
    %v1402 = vadd.f32 %v1251, %v1401
    %v1403 = vpop.f32.mrb[0].mxu0
    %1404 = vdwg.mxu0
    %1405 = vmatprep.subr.mxu0 0.0
    %v1406 = vand.u32 %v504, 4294901760
    %v1407 = vsub.f32 %v504, %v1406
    %1408 = vmatpush1.msra.mxu0 %v1407
    %1409 = vmatprep.subr.mxu0 0.0
    %v1410 = vand.u32 %v505, 4294901760
    %v1411 = vsub.f32 %v505, %v1410
    %1412 = vmatpush1.msra.mxu0 %v1411
    %1413 = vmatprep.subr.mxu0 0.0
    %v1414 = vand.u32 %v506, 4294901760
    %v1415 = vsub.f32 %v506, %v1414
    %1416 = vmatpush1.msra.mxu0 %v1415
    %1417 = vmatprep.subr.mxu0 0.0
    %v1418 = vand.u32 %v507, 4294901760
    %v1419 = vsub.f32 %v507, %v1418
    %1420 = vmatpush1.msra.mxu0 %v1419
    %1421 = vmatprep.subr.mxu0 0.0
    %v1422 = vand.u32 %v508, 4294901760
    %v1423 = vsub.f32 %v508, %v1422
    %1424 = vmatpush1.msra.mxu0 %v1423
    %1425 = vmatprep.subr.mxu0 0.0
    %v1426 = vand.u32 %v509, 4294901760
    %v1427 = vsub.f32 %v509, %v1426
    %1428 = vmatpush1.msra.mxu0 %v1427
    %1429 = vmatprep.subr.mxu0 0.0
    %v1430 = vand.u32 %v510, 4294901760
    %v1431 = vsub.f32 %v510, %v1430
    %1432 = vmatpush1.msra.mxu0 %v1431
    %1433 = vmatprep.subr.mxu0 0.0
    %v1434 = vand.u32 %v511, 4294901760
    %v1435 = vsub.f32 %v511, %v1434
    %1436 = vmatpush1.msra.mxu0 %v1435
    %1437 = vmatprep.subr.mxu0 0.0
    %v1438 = vand.u32 %v512, 4294901760
    %v1439 = vsub.f32 %v512, %v1438
    %1440 = vmatpush1.msra.mxu0 %v1439
    %1441 = vmatprep.subr.mxu0 0.0
    %v1442 = vand.u32 %v513, 4294901760
    %v1443 = vsub.f32 %v513, %v1442
    %1444 = vmatpush1.msra.mxu0 %v1443
    %1445 = vmatprep.subr.mxu0 0.0
    %v1446 = vand.u32 %v514, 4294901760
    %v1447 = vsub.f32 %v514, %v1446
    %1448 = vmatpush1.msra.mxu0 %v1447
    %1449 = vmatprep.subr.mxu0 0.0
    %v1450 = vand.u32 %v515, 4294901760
    %v1451 = vsub.f32 %v515, %v1450
    %1452 = vmatpush1.msra.mxu0 %v1451
    %1453 = vmatprep.subr.mxu0 0.0
    %v1454 = vand.u32 %v516, 4294901760
    %v1455 = vsub.f32 %v516, %v1454
    %1456 = vmatpush1.msra.mxu0 %v1455
    %1457 = vmatprep.subr.mxu0 0.0
    %v1458 = vand.u32 %v517, 4294901760
    %v1459 = vsub.f32 %v517, %v1458
    %1460 = vmatpush1.msra.mxu0 %v1459
    %1461 = vmatprep.subr.mxu0 0.0
    %v1462 = vand.u32 %v518, 4294901760
    %v1463 = vsub.f32 %v518, %v1462
    %1464 = vmatpush1.msra.mxu0 %v1463
    %1465 = vmatprep.subr.mxu0 0.0
    %v1466 = vand.u32 %v519, 4294901760
    %v1467 = vsub.f32 %v519, %v1466
    %1468 = vmatpush1.msra.mxu0 %v1467
    %1469 = vmatprep.subr.mxu0 0.0
    %1470 = vmatpush1.msra.mxu0 0.0
    %1471 = vmatprep.subr.mxu0 0.0
    %1472 = vmatpush1.msra.mxu0 0.0
    %1473 = vmatprep.subr.mxu0 0.0
    %1474 = vmatpush1.msra.mxu0 0.0
    %1475 = vmatprep.subr.mxu0 0.0
    %1476 = vmatpush1.msra.mxu0 0.0
    %1477 = vmatprep.subr.mxu0 0.0
    %1478 = vmatpush1.msra.mxu0 0.0
    %1479 = vmatprep.subr.mxu0 0.0
    %1480 = vmatpush1.msra.mxu0 0.0
    %1481 = vmatprep.subr.mxu0 0.0
    %1482 = vmatpush1.msra.mxu0 0.0
    %1483 = vmatprep.subr.mxu0 0.0
    %1484 = vmatpush1.msra.mxu0 0.0
    %1485 = vmatprep.subr.mxu0 0.0
    %1486 = vmatpush1.msra.mxu0 0.0
    %1487 = vmatprep.subr.mxu0 0.0
    %1488 = vmatpush1.msra.mxu0 0.0
    %1489 = vmatprep.subr.mxu0 0.0
    %1490 = vmatpush1.msra.mxu0 0.0
    %1491 = vmatprep.subr.mxu0 0.0
    %1492 = vmatpush1.msra.mxu0 0.0
    %1493 = vmatprep.subr.mxu0 0.0
    %1494 = vmatpush1.msra.mxu0 0.0
    %1495 = vmatprep.subr.mxu0 0.0
    %1496 = vmatpush1.msra.mxu0 0.0
    %1497 = vmatprep.subr.mxu0 0.0
    %1498 = vmatpush1.msra.mxu0 0.0
    %1499 = vmatprep.subr.mxu0 0.0
    %1500 = vmatpush1.msra.mxu0 0.0
    %1501 = vmatprep.mubr.f32.mxu0 0.0
    %v1502 = vand.u32 %v1162, 4294901760
    %v1503 = vsub.f32 %v1162, %v1502
    %1504 = vmatmul.mubr.f32.gmra.mrb[0].mxu0 %v1503
    %v1505 = vpop.f32.mrb[0].mxu0
    %v1506 = vadd.f32 %v1402, %v1505
    %v1507 = vpop.f32.mrb[0].mxu0
    %1508 = vdwg.mxu0
    %1509 = vmatprep.subr.mxu0 0.0
    %v1510 = vand.u32 %v504, 4294901760
    %1511 = vmatpush1.msra.mxu0 %v1510
    %1512 = vmatprep.subr.mxu0 0.0
    %v1513 = vand.u32 %v505, 4294901760
    %1514 = vmatpush1.msra.mxu0 %v1513
    %1515 = vmatprep.subr.mxu0 0.0
    %v1516 = vand.u32 %v506, 4294901760
    %1517 = vmatpush1.msra.mxu0 %v1516
    %1518 = vmatprep.subr.mxu0 0.0
    %v1519 = vand.u32 %v507, 4294901760
    %1520 = vmatpush1.msra.mxu0 %v1519
    %1521 = vmatprep.subr.mxu0 0.0
    %v1522 = vand.u32 %v508, 4294901760
    %1523 = vmatpush1.msra.mxu0 %v1522
    %1524 = vmatprep.subr.mxu0 0.0
    %v1525 = vand.u32 %v509, 4294901760
    %1526 = vmatpush1.msra.mxu0 %v1525
    %1527 = vmatprep.subr.mxu0 0.0
    %v1528 = vand.u32 %v510, 4294901760
    %1529 = vmatpush1.msra.mxu0 %v1528
    %1530 = vmatprep.subr.mxu0 0.0
    %v1531 = vand.u32 %v511, 4294901760
    %1532 = vmatpush1.msra.mxu0 %v1531
    %1533 = vmatprep.subr.mxu0 0.0
    %v1534 = vand.u32 %v512, 4294901760
    %1535 = vmatpush1.msra.mxu0 %v1534
    %1536 = vmatprep.subr.mxu0 0.0
    %v1537 = vand.u32 %v513, 4294901760
    %1538 = vmatpush1.msra.mxu0 %v1537
    %1539 = vmatprep.subr.mxu0 0.0
    %v1540 = vand.u32 %v514, 4294901760
    %1541 = vmatpush1.msra.mxu0 %v1540
    %1542 = vmatprep.subr.mxu0 0.0
    %v1543 = vand.u32 %v515, 4294901760
    %1544 = vmatpush1.msra.mxu0 %v1543
    %1545 = vmatprep.subr.mxu0 0.0
    %v1546 = vand.u32 %v516, 4294901760
    %1547 = vmatpush1.msra.mxu0 %v1546
    %1548 = vmatprep.subr.mxu0 0.0
    %v1549 = vand.u32 %v517, 4294901760
    %1550 = vmatpush1.msra.mxu0 %v1549
    %1551 = vmatprep.subr.mxu0 0.0
    %v1552 = vand.u32 %v518, 4294901760
    %1553 = vmatpush1.msra.mxu0 %v1552
    %1554 = vmatprep.subr.mxu0 0.0
    %v1555 = vand.u32 %v519, 4294901760
    %1556 = vmatpush1.msra.mxu0 %v1555
    %1557 = vmatprep.subr.mxu0 0.0
    %1558 = vmatpush1.msra.mxu0 0.0
    %1559 = vmatprep.subr.mxu0 0.0
    %1560 = vmatpush1.msra.mxu0 0.0
    %1561 = vmatprep.subr.mxu0 0.0
    %1562 = vmatpush1.msra.mxu0 0.0
    %1563 = vmatprep.subr.mxu0 0.0
    %1564 = vmatpush1.msra.mxu0 0.0
    %1565 = vmatprep.subr.mxu0 0.0
    %1566 = vmatpush1.msra.mxu0 0.0
    %1567 = vmatprep.subr.mxu0 0.0
    %1568 = vmatpush1.msra.mxu0 0.0
    %1569 = vmatprep.subr.mxu0 0.0
    %1570 = vmatpush1.msra.mxu0 0.0
    %1571 = vmatprep.subr.mxu0 0.0
    %1572 = vmatpush1.msra.mxu0 0.0
    %1573 = vmatprep.subr.mxu0 0.0
    %1574 = vmatpush1.msra.mxu0 0.0
    %1575 = vmatprep.subr.mxu0 0.0
    %1576 = vmatpush1.msra.mxu0 0.0
    %1577 = vmatprep.subr.mxu0 0.0
    %1578 = vmatpush1.msra.mxu0 0.0
    %1579 = vmatprep.subr.mxu0 0.0
    %1580 = vmatpush1.msra.mxu0 0.0
    %1581 = vmatprep.subr.mxu0 0.0
    %1582 = vmatpush1.msra.mxu0 0.0
    %1583 = vmatprep.subr.mxu0 0.0
    %1584 = vmatpush1.msra.mxu0 0.0
    %1585 = vmatprep.subr.mxu0 0.0
    %1586 = vmatpush1.msra.mxu0 0.0
    %1587 = vmatprep.subr.mxu0 0.0
    %1588 = vmatpush1.msra.mxu0 0.0
    %1589 = vmatprep.mubr.f32.mxu0 0.0
    %v1590 = vand.u32 %v1162, 4294901760
    %v1591 = vsub.f32 %v1162, %v1590
    %v1592 = vand.u32 %v1591, 4294901760
    %1593 = vmatmul.mubr.f32.gmra.mrb[0].mxu0 %v1592
    %v1594 = vpop.f32.mrb[0].mxu0
    %v1595 = vadd.f32 %v1506, %v1594
    %v1596 = vpop.f32.mrb[0].mxu0
    %1597 = vdwg.mxu0
    %1598 = vmatprep.subr.mxu0 0.0
    %v1599 = vand.u32 %v504, 4294901760
    %v1600 = vsub.f32 %v504, %v1599
    %v1601 = vand.u32 %v1600, 4294901760
    %1602 = vmatpush1.msra.mxu0 %v1601
    %1603 = vmatprep.subr.mxu0 0.0
    %v1604 = vand.u32 %v505, 4294901760
    %v1605 = vsub.f32 %v505, %v1604
    %v1606 = vand.u32 %v1605, 4294901760
    %1607 = vmatpush1.msra.mxu0 %v1606
    %1608 = vmatprep.subr.mxu0 0.0
    %v1609 = vand.u32 %v506, 4294901760
    %v1610 = vsub.f32 %v506, %v1609
    %v1611 = vand.u32 %v1610, 4294901760
    %1612 = vmatpush1.msra.mxu0 %v1611
    %1613 = vmatprep.subr.mxu0 0.0
    %v1614 = vand.u32 %v507, 4294901760
    %v1615 = vsub.f32 %v507, %v1614
    %v1616 = vand.u32 %v1615, 4294901760
    %1617 = vmatpush1.msra.mxu0 %v1616
    %1618 = vmatprep.subr.mxu0 0.0
    %v1619 = vand.u32 %v508, 4294901760
    %v1620 = vsub.f32 %v508, %v1619
    %v1621 = vand.u32 %v1620, 4294901760
    %1622 = vmatpush1.msra.mxu0 %v1621
    %1623 = vmatprep.subr.mxu0 0.0
    %v1624 = vand.u32 %v509, 4294901760
    %v1625 = vsub.f32 %v509, %v1624
    %v1626 = vand.u32 %v1625, 4294901760
    %1627 = vmatpush1.msra.mxu0 %v1626
    %1628 = vmatprep.subr.mxu0 0.0
    %v1629 = vand.u32 %v510, 4294901760
    %v1630 = vsub.f32 %v510, %v1629
    %v1631 = vand.u32 %v1630, 4294901760
    %1632 = vmatpush1.msra.mxu0 %v1631
    %1633 = vmatprep.subr.mxu0 0.0
    %v1634 = vand.u32 %v511, 4294901760
    %v1635 = vsub.f32 %v511, %v1634
    %v1636 = vand.u32 %v1635, 4294901760
    %1637 = vmatpush1.msra.mxu0 %v1636
    %1638 = vmatprep.subr.mxu0 0.0
    %v1639 = vand.u32 %v512, 4294901760
    %v1640 = vsub.f32 %v512, %v1639
    %v1641 = vand.u32 %v1640, 4294901760
    %1642 = vmatpush1.msra.mxu0 %v1641
    %1643 = vmatprep.subr.mxu0 0.0
    %v1644 = vand.u32 %v513, 4294901760
    %v1645 = vsub.f32 %v513, %v1644
    %v1646 = vand.u32 %v1645, 4294901760
    %1647 = vmatpush1.msra.mxu0 %v1646
    %1648 = vmatprep.subr.mxu0 0.0
    %v1649 = vand.u32 %v514, 4294901760
    %v1650 = vsub.f32 %v514, %v1649
    %v1651 = vand.u32 %v1650, 4294901760
    %1652 = vmatpush1.msra.mxu0 %v1651
    %1653 = vmatprep.subr.mxu0 0.0
    %v1654 = vand.u32 %v515, 4294901760
    %v1655 = vsub.f32 %v515, %v1654
    %v1656 = vand.u32 %v1655, 4294901760
    %1657 = vmatpush1.msra.mxu0 %v1656
    %1658 = vmatprep.subr.mxu0 0.0
    %v1659 = vand.u32 %v516, 4294901760
    %v1660 = vsub.f32 %v516, %v1659
    %v1661 = vand.u32 %v1660, 4294901760
    %1662 = vmatpush1.msra.mxu0 %v1661
    %1663 = vmatprep.subr.mxu0 0.0
    %v1664 = vand.u32 %v517, 4294901760
    %v1665 = vsub.f32 %v517, %v1664
    %v1666 = vand.u32 %v1665, 4294901760
    %1667 = vmatpush1.msra.mxu0 %v1666
    %1668 = vmatprep.subr.mxu0 0.0
    %v1669 = vand.u32 %v518, 4294901760
    %v1670 = vsub.f32 %v518, %v1669
    %v1671 = vand.u32 %v1670, 4294901760
    %1672 = vmatpush1.msra.mxu0 %v1671
    %1673 = vmatprep.subr.mxu0 0.0
    %v1674 = vand.u32 %v519, 4294901760
    %v1675 = vsub.f32 %v519, %v1674
    %v1676 = vand.u32 %v1675, 4294901760
    %1677 = vmatpush1.msra.mxu0 %v1676
    %1678 = vmatprep.subr.mxu0 0.0
    %1679 = vmatpush1.msra.mxu0 0.0
    %1680 = vmatprep.subr.mxu0 0.0
    %1681 = vmatpush1.msra.mxu0 0.0
    %1682 = vmatprep.subr.mxu0 0.0
    %1683 = vmatpush1.msra.mxu0 0.0
    %1684 = vmatprep.subr.mxu0 0.0
    %1685 = vmatpush1.msra.mxu0 0.0
    %1686 = vmatprep.subr.mxu0 0.0
    %1687 = vmatpush1.msra.mxu0 0.0
    %1688 = vmatprep.subr.mxu0 0.0
    %1689 = vmatpush1.msra.mxu0 0.0
    %1690 = vmatprep.subr.mxu0 0.0
    %1691 = vmatpush1.msra.mxu0 0.0
    %1692 = vmatprep.subr.mxu0 0.0
    %1693 = vmatpush1.msra.mxu0 0.0
    %1694 = vmatprep.subr.mxu0 0.0
    %1695 = vmatpush1.msra.mxu0 0.0
    %1696 = vmatprep.subr.mxu0 0.0
    %1697 = vmatpush1.msra.mxu0 0.0
    %1698 = vmatprep.subr.mxu0 0.0
    %1699 = vmatpush1.msra.mxu0 0.0
    %1700 = vmatprep.subr.mxu0 0.0
    %1701 = vmatpush1.msra.mxu0 0.0
    %1702 = vmatprep.subr.mxu0 0.0
    %1703 = vmatpush1.msra.mxu0 0.0
    %1704 = vmatprep.subr.mxu0 0.0
    %1705 = vmatpush1.msra.mxu0 0.0
    %1706 = vmatprep.subr.mxu0 0.0
    %1707 = vmatpush1.msra.mxu0 0.0
    %1708 = vmatprep.subr.mxu0 0.0
    %1709 = vmatpush1.msra.mxu0 0.0
    %1710 = vmatprep.mubr.f32.mxu0 0.0
    %v1711 = vand.u32 %v1162, 4294901760
    %1712 = vmatmul.mubr.f32.gmra.mrb[0].mxu0 %v1711
    %v1713 = vpop.f32.mrb[0].mxu0
    %v1714 = vadd.f32 %v1595, %v1713
    %v1715 = vpop.f32.mrb[0].mxu0
    %1716 = vdwg.mxu0
    %1717 = vmatprep.subr.mxu0 0.0
    %v1718 = vand.u32 %v504, 4294901760
    %1719 = vmatpush1.msra.mxu0 %v1718
    %1720 = vmatprep.subr.mxu0 0.0
    %v1721 = vand.u32 %v505, 4294901760
    %1722 = vmatpush1.msra.mxu0 %v1721
    %1723 = vmatprep.subr.mxu0 0.0
    %v1724 = vand.u32 %v506, 4294901760
    %1725 = vmatpush1.msra.mxu0 %v1724
    %1726 = vmatprep.subr.mxu0 0.0
    %v1727 = vand.u32 %v507, 4294901760
    %1728 = vmatpush1.msra.mxu0 %v1727
    %1729 = vmatprep.subr.mxu0 0.0
    %v1730 = vand.u32 %v508, 4294901760
    %1731 = vmatpush1.msra.mxu0 %v1730
    %1732 = vmatprep.subr.mxu0 0.0
    %v1733 = vand.u32 %v509, 4294901760
    %1734 = vmatpush1.msra.mxu0 %v1733
    %1735 = vmatprep.subr.mxu0 0.0
    %v1736 = vand.u32 %v510, 4294901760
    %1737 = vmatpush1.msra.mxu0 %v1736
    %1738 = vmatprep.subr.mxu0 0.0
    %v1739 = vand.u32 %v511, 4294901760
    %1740 = vmatpush1.msra.mxu0 %v1739
    %1741 = vmatprep.subr.mxu0 0.0
    %v1742 = vand.u32 %v512, 4294901760
    %1743 = vmatpush1.msra.mxu0 %v1742
    %1744 = vmatprep.subr.mxu0 0.0
    %v1745 = vand.u32 %v513, 4294901760
    %1746 = vmatpush1.msra.mxu0 %v1745
    %1747 = vmatprep.subr.mxu0 0.0
    %v1748 = vand.u32 %v514, 4294901760
    %1749 = vmatpush1.msra.mxu0 %v1748
    %1750 = vmatprep.subr.mxu0 0.0
    %v1751 = vand.u32 %v515, 4294901760
    %1752 = vmatpush1.msra.mxu0 %v1751
    %1753 = vmatprep.subr.mxu0 0.0
    %v1754 = vand.u32 %v516, 4294901760
    %1755 = vmatpush1.msra.mxu0 %v1754
    %1756 = vmatprep.subr.mxu0 0.0
    %v1757 = vand.u32 %v517, 4294901760
    %1758 = vmatpush1.msra.mxu0 %v1757
    %1759 = vmatprep.subr.mxu0 0.0
    %v1760 = vand.u32 %v518, 4294901760
    %1761 = vmatpush1.msra.mxu0 %v1760
    %1762 = vmatprep.subr.mxu0 0.0
    %v1763 = vand.u32 %v519, 4294901760
    %1764 = vmatpush1.msra.mxu0 %v1763
    %1765 = vmatprep.subr.mxu0 0.0
    %1766 = vmatpush1.msra.mxu0 0.0
    %1767 = vmatprep.subr.mxu0 0.0
    %1768 = vmatpush1.msra.mxu0 0.0
    %1769 = vmatprep.subr.mxu0 0.0
    %1770 = vmatpush1.msra.mxu0 0.0
    %1771 = vmatprep.subr.mxu0 0.0
    %1772 = vmatpush1.msra.mxu0 0.0
    %1773 = vmatprep.subr.mxu0 0.0
    %1774 = vmatpush1.msra.mxu0 0.0
    %1775 = vmatprep.subr.mxu0 0.0
    %1776 = vmatpush1.msra.mxu0 0.0
    %1777 = vmatprep.subr.mxu0 0.0
    %1778 = vmatpush1.msra.mxu0 0.0
    %1779 = vmatprep.subr.mxu0 0.0
    %1780 = vmatpush1.msra.mxu0 0.0
    %1781 = vmatprep.subr.mxu0 0.0
    %1782 = vmatpush1.msra.mxu0 0.0
    %1783 = vmatprep.subr.mxu0 0.0
    %1784 = vmatpush1.msra.mxu0 0.0
    %1785 = vmatprep.subr.mxu0 0.0
    %1786 = vmatpush1.msra.mxu0 0.0
    %1787 = vmatprep.subr.mxu0 0.0
    %1788 = vmatpush1.msra.mxu0 0.0
    %1789 = vmatprep.subr.mxu0 0.0
    %1790 = vmatpush1.msra.mxu0 0.0
    %1791 = vmatprep.subr.mxu0 0.0
    %1792 = vmatpush1.msra.mxu0 0.0
    %1793 = vmatprep.subr.mxu0 0.0
    %1794 = vmatpush1.msra.mxu0 0.0
    %1795 = vmatprep.subr.mxu0 0.0
    %1796 = vmatpush1.msra.mxu0 0.0
    %1797 = vmatprep.mubr.f32.mxu0 0.0
    %v1798 = vand.u32 %v1162, 4294901760
    %1799 = vmatmul.mubr.f32.gmra.mrb[0].mxu0 %v1798
    %v1800 = vpop.f32.mrb[0].mxu0
    %v1801 = vadd.f32 %v1714, %v1800
    %v1802 = vpop.f32.mrb[0].mxu0
    %1803 = vdwg.mxu0
    %v1804 = vrsqrt.pop %v1801
    %v1805 = vmul.f32 %v1161, %v1804
    %v1806 = vlaneseq
    %v1807 = vshrl.u32 %v1806, 7
    %v1808 = vsub.s32 0, %v1807
    %v1809 = vrot.slane %v33, %v1808
    %v1810 = vmul.f32 %v1805, %v1809
    %v1811 = vlaneseq
    %v1812 = vshrl.u32 %v1811, 7
    %v1813 = vsub.s32 0, %v1812
    %v1814 = vrot.slane %v34, %v1813
    %v1815 = vadd.f32 %v1810, %v1814
    %1816 = vst [vmem:[%s4] sm:$0xff] %v1815
    // Predicated region
    $region22: #{cont_embedding_projector_packed.1} parent=1 // pred_check
      _
    $region23: #{cont_embedding_projector_packed.1} parent=1 // pred_check_branch
      %1818 = sbr.rel (0) target = $region25
    $region24: #{cont_embedding_projector_packed.1} parent=1 // pred_region
      _
    $region25: #{cont_embedding_projector_packed.1} parent=1 // pred_fallthru
      _
    // Predicated region
    $region26: #{cont_embedding_projector_packed.1} parent=1 // pred_check
      _
    $region27: #{cont_embedding_projector_packed.1} parent=1 // pred_check_branch
      %1820 = sbr.rel (0) target = $region29
    $region28: #{cont_embedding_projector_packed.1} parent=1 // pred_region
      _
    $region29: #{cont_embedding_projector_packed.1} parent=1 // pred_fallthru
      _
    %1821 = vsyncpa [#allocation3], 1

</llo_original>
